<compile_context>
chip_gen: v5e
topology: v5e:2x2
jax: 0.10.0
libtpu: 0.0.40
codegen_flags: <defaults>
</compile_context>

<pallas_src>
import functools

import jax
import jax.numpy as jnp
from jax.experimental import pallas as pl
from jax.experimental.pallas import tpu as pltpu

EPS_BN = 1e-5


# ---------------------------------------------------------------------------
# Fused Pallas kernel: input_fc -> L residual GCN layers -> out_fc + log_softmax
# (single grid step; layers unrolled statically inside the kernel)
# ---------------------------------------------------------------------------
def _gcn_res_kernel(wsm_ref,                              # SMEM [L] softmax(layer weights)
                    x_ref, w_in_ref, b_in_ref,            # raw input + input_fc
                    adj_ref, w_ref, b_ref,                # [2,N,N] adj, per-layer conv (BN folded)
                    w_out_ref, b_out_ref,                 # out_fc
                    o_ref,                                # logits output [N, C]
                    *, num_layers):
    # input_fc: x @ W_in^T + b_in  (bf16 operands, f32 accumulation)
    x = (jnp.dot(x_ref[...].astype(jnp.bfloat16), w_in_ref[...],
                 preferred_element_type=jnp.float32) + b_in_ref[...])
    acc = jnp.zeros_like(x)

    # TODO(synk): F.dropout(p=0.5) is identity in eval mode (training=False).
    for i in range(num_layers):
        # Reference uses `i < num_layers / 2` (float division); static per-layer pick.
        a = adj_ref[0] if i < num_layers / 2 else adj_ref[1]
        # GCNConv_i + folded eval-BatchNorm + ReLU: relu(A_hat @ (x @ W'_i) + b'_i)
        xw = jnp.dot(x.astype(jnp.bfloat16), w_ref[i],
                     preferred_element_type=jnp.float32)
        h = jnp.dot(a, xw.astype(jnp.bfloat16),
                    preferred_element_type=jnp.float32) + b_ref[i]
        h = jnp.maximum(h, 0.0)
        x = h                                    # carry to next layer
        acc = acc + h * wsm_ref[i]               # softmax(weights)[i] * layer_out[i]

    logits = (jnp.dot(acc.astype(jnp.bfloat16), w_out_ref[...],
                      preferred_element_type=jnp.float32) + b_out_ref[...])
    m = jnp.max(logits, axis=-1, keepdims=True)
    lse = jnp.log(jnp.sum(jnp.exp(logits - m), axis=-1, keepdims=True)) + m
    o_ref[...] = logits - lse


# ---------------------------------------------------------------------------
# Glue (plain JAX): adjacency normalization, param folding/padding, pallas_call
# ---------------------------------------------------------------------------
def _gcn_norm(adj):
    n = adj.shape[0]
    a = adj + jnp.eye(n, dtype=adj.dtype)          # add self loops
    d = jax.lax.rsqrt(jnp.sum(a, axis=1))
    return a * d[:, None] * d[None, :]             # D^-1/2 (A+I) D^-1/2


@functools.partial(jax.jit, static_argnames=("num_layers",))
def gcn_res_forward(x, adj1, adj2, p, num_layers):
    N, F = x.shape
    H = p["w_in"].shape[0]
    C = p["w_out"].shape[0]
    Hp = ((H + 127) // 128) * 128                  # lane-dense hidden width

    # Normalized adjacencies, stored bf16 for MXU + halved VMEM residency.
    adjs = jnp.stack([_gcn_norm(adj1), _gcn_norm(adj2)], axis=0).astype(jnp.bfloat16)

    # Fold eval-mode BatchNorm1d + conv bias into per-layer weight/bias (in f32):
    #   (A@(x@W^T) + b)*s + t  ==  A@(x@(W^T * s_cols)) + (b*s + t)
    bn_scale = p["bn_gamma"] * jax.lax.rsqrt(p["bn_var"] + EPS_BN)          # [L, H]
    bn_shift = p["bn_beta"] - p["bn_mean"] * bn_scale                        # [L, H]
    w_conv = jnp.transpose(p["conv_w"], (0, 2, 1)) * bn_scale[:, None, :]    # [L, Hin, Hout]
    b_conv = p["conv_b"] * bn_scale + bn_shift                               # [L, H]

    # Zero-pad the hidden dim to Hp (padded channels stay exactly 0 through relu,
    # the weighted sum and out_fc). Matmul operands cast to bf16; biases stay f32.
    dH = Hp - H
    w_in_p = jnp.pad(p["w_in"].T, ((0, 0), (0, dH))).astype(jnp.bfloat16)      # [F, Hp]
    b_in_p = jnp.pad(p["b_in"], ((0, dH),)).reshape(1, Hp)                     # [1, Hp] f32
    w_conv_p = jnp.pad(w_conv, ((0, 0), (0, dH), (0, dH))).astype(jnp.bfloat16)  # [L, Hp, Hp]
    b_conv_p = jnp.pad(b_conv, ((0, 0), (0, dH))).reshape(num_layers, 1, Hp)   # [L, 1, Hp] f32
    w_out_p = jnp.pad(p["w_out"].T, ((0, dH), (0, 0))).astype(jnp.bfloat16)    # [Hp, C]
    b_out = p["b_out"].reshape(1, C)                                           # [1, C] f32

    wsm = jax.nn.softmax(p["layer_weights"], axis=0)                           # [L] f32 (SMEM)

    # ---- cost estimate + explicit VMEM budget ----
    in_bytes = (x.size * 4 + w_in_p.size * 2 + b_in_p.size * 4 + adjs.size * 2
                + w_conv_p.size * 2 + b_conv_p.size * 4 + w_out_p.size * 2
                + b_out.size * 4 + wsm.size * 4)
    out_bytes = N * C * 4
    flops = (2 * N * F * Hp
             + num_layers * (2 * N * Hp * Hp + 2 * N * N * Hp)
             + 2 * N * Hp * C)
    # inputs/outputs (conservatively x2) + live f32 intermediates + headroom,
    # capped below the v7x per-TC physical ceiling.
    vmem_budget = int(min(100 << 20,
                          2 * (in_bytes + out_bytes) + 6 * N * Hp * 4 + (4 << 20)))

    vmem = pltpu.MemorySpace.VMEM
    smem = pltpu.MemorySpace.SMEM
    kernel = functools.partial(_gcn_res_kernel, num_layers=num_layers)

    return pl.pallas_call(
        kernel,
        out_shape=jax.ShapeDtypeStruct((N, C), jnp.float32),
        in_specs=[
            pl.BlockSpec(memory_space=smem),    # softmax(layer weights)  [L]
            pl.BlockSpec(memory_space=vmem),    # raw x                   [N, F]
            pl.BlockSpec(memory_space=vmem),    # input_fc weight         [F, Hp] bf16
            pl.BlockSpec(memory_space=vmem),    # input_fc bias           [1, Hp]
            pl.BlockSpec(memory_space=vmem),    # normalized adjacencies  [2, N, N] bf16
            pl.BlockSpec(memory_space=vmem),    # folded conv weights     [L, Hp, Hp] bf16
            pl.BlockSpec(memory_space=vmem),    # folded conv biases      [L, 1, Hp]
            pl.BlockSpec(memory_space=vmem),    # out_fc weight           [Hp, C] bf16
            pl.BlockSpec(memory_space=vmem),    # out_fc bias             [1, C]
        ],
        out_specs=pl.BlockSpec(memory_space=vmem),
        compiler_params=pltpu.CompilerParams(vmem_limit_bytes=vmem_budget),
        cost_estimate=pl.CostEstimate(
            flops=flops, transcendentals=N * C,
            bytes_accessed=in_bytes + out_bytes),
    )(wsm, x, w_in_p, b_in_p, adjs, w_conv_p, b_conv_p, w_out_p, b_out)


# ---------------------------------------------------------------------------
# Pure-JAX f32 reference (unpadded, unfused) for correctness checking
# ---------------------------------------------------------------------------
def reference_forward(x, adj1, adj2, p, num_layers):
    a1, a2 = _gcn_norm(adj1), _gcn_norm(adj2)
    h = x @ p["w_in"].T + p["b_in"]
    wsm = jax.nn.softmax(p["layer_weights"], axis=0)
    acc = jnp.zeros_like(h)
    for i in range(num_layers):
        a = a1 if i < num_layers / 2 else a2
        h = a @ (h @ p["conv_w"][i].T) + p["conv_b"][i]
        scale = p["bn_gamma"][i] * jax.lax.rsqrt(p["bn_var"][i] + EPS_BN)
        h = (h - p["bn_mean"][i]) * scale + p["bn_beta"][i]
        h = jnp.maximum(h, 0.0)
        acc = acc + h * wsm[i]
    logits = acc @ p["w_out"].T + p["b_out"]
    return jax.nn.log_softmax(logits, axis=1)


# ---------------------------------------------------------------------------
# Deterministic synthetic params + inputs
# ---------------------------------------------------------------------------
def init_params(key, num_features, hidden, num_classes, num_layers):
    ks = jax.random.split(key, 8)

    def uniform(k, shape, fan_in):
        bound = 1.0 / jnp.sqrt(jnp.float32(fan_in))
        return jax.random.uniform(k, shape, jnp.float32, -bound, bound)

    return {
        "w_in": uniform(ks[0], (hidden, num_features), num_features),
        "b_in": uniform(ks[1], (hidden,), num_features),
        "conv_w": uniform(ks[2], (num_layers, hidden, hidden), hidden),
        "conv_b": uniform(ks[3], (num_layers, hidden), hidden),
        "bn_gamma": 1.0 + 0.1 * jax.random.normal(ks[4], (num_layers, hidden), jnp.float32),
        "bn_beta": 0.1 * jax.random.normal(ks[5], (num_layers, hidden), jnp.float32),
        "bn_mean": jnp.zeros((num_layers, hidden), jnp.float32),
        "bn_var": jnp.ones((num_layers, hidden), jnp.float32),
        "w_out": uniform(ks[6], (num_classes, hidden), hidden),
        "b_out": uniform(ks[7], (num_classes,), hidden),
        "layer_weights": jax.random.normal(ks[0], (num_layers,), jnp.float32),
    }


if __name__ == "__main__":
    N, F, H, C, L = 128, 8, 64, 16, 8  # nodes, features, hidden, classes, layers

    key = jax.random.PRNGKey(0)
    kx, ka1, ka2, kp = jax.random.split(key, 4)

    x = jax.random.normal(kx, (N, F), jnp.float32)

    def rand_adj(k):
        r = (jax.random.uniform(k, (N, N)) < 0.05).astype(jnp.float32)
        a = jnp.maximum(r, r.T)
        return a * (1.0 - jnp.eye(N, dtype=jnp.float32))

    adj1, adj2 = rand_adj(ka1), rand_adj(ka2)
    params = init_params(kp, F, H, C, L)

    out = gcn_res_forward(x, adj1, adj2, params, L)
    out = jax.block_until_ready(out)

    ref = reference_forward(x, adj1, adj2, params, L)
    assert out.shape == (N, C) and out.dtype == jnp.float32
    # Tolerance loosened vs. the pure-f32 version because matmul operands are
    # bf16 (accumulation stays f32), per the performance review.
    assert jnp.allclose(out, ref, atol=3e-2, rtol=3e-2), "mismatch vs reference"

    print("KERNEL_OK")
</pallas_src>

<mosaic_0001>
module attributes {stable_mosaic.version = 11 : i64} {
  func.func @_gcn_res_kernel(%arg0: memref<8xf32, #tpu.memory_space<smem>>, %arg1: memref<128x8xf32, #tpu.memory_space<vmem>>, %arg2: memref<8x128xbf16, #tpu.memory_space<vmem>>, %arg3: memref<1x128xf32, #tpu.memory_space<vmem>>, %arg4: memref<2x128x128xbf16, #tpu.memory_space<vmem>>, %arg5: memref<8x128x128xbf16, #tpu.memory_space<vmem>>, %arg6: memref<8x1x128xf32, #tpu.memory_space<vmem>>, %arg7: memref<128x16xbf16, #tpu.memory_space<vmem>>, %arg8: memref<1x16xf32, #tpu.memory_space<vmem>>, %arg9: memref<128x16xf32, #tpu.memory_space<vmem>>) attributes {dimension_semantics = [], scalar_prefetch = 0 : i64, scratch_operands = 0 : i64, tpu.core_type = #tpu.core_type<tc>} {
    %c0 = arith.constant 0 : index
    %c0_0 = arith.constant 0 : index
    %0 = vector.load %arg1[%c0, %c0_0] : memref<128x8xf32, #tpu.memory_space<vmem>>, vector<128x8xf32>
    %1 = arith.truncf %0 : vector<128x8xf32> to vector<128x8xbf16>
    %c0_1 = arith.constant 0 : index
    %c0_2 = arith.constant 0 : index
    %2 = vector.load %arg2[%c0_1, %c0_2] : memref<8x128xbf16, #tpu.memory_space<vmem>>, vector<8x128xbf16>
    %cst = arith.constant dense<0.000000e+00> : vector<128x128xf32>
    %3 = tpu.matmul %1, %2, %cst {dimension_numbers = #tpu.dot_dimension_numbers<[1], [0], [0], [1], [0, 0, 1, 1], [], []>} : vector<128x8xbf16>, vector<8x128xbf16>, vector<128x128xf32> -> vector<128x128xf32>
    %c0_3 = arith.constant 0 : index
    %c0_4 = arith.constant 0 : index
    %4 = vector.load %arg3[%c0_3, %c0_4] : memref<1x128xf32, #tpu.memory_space<vmem>>, vector<1x128xf32>
    %5 = vector.broadcast %4 : vector<1x128xf32> to vector<128x128xf32>
    %6 = arith.addf %3, %5 : vector<128x128xf32>
    %cst_5 = arith.constant 0.000000e+00 : f32
    %7 = vector.broadcast %cst_5 : f32 to vector<128x128xf32>
    %c0_6 = arith.constant 0 : index
    %c0_7 = arith.constant 0 : index
    %c0_8 = arith.constant 0 : index
    %8 = vector.load %arg4[%c0_6, %c0_7, %c0_8] : memref<2x128x128xbf16, #tpu.memory_space<vmem>>, vector<1x128x128xbf16>
    %9 = vector.shape_cast %8 : vector<1x128x128xbf16> to vector<128x128xbf16>
    %10 = arith.truncf %6 : vector<128x128xf32> to vector<128x128xbf16>
    %c0_9 = arith.constant 0 : index
    %c0_10 = arith.constant 0 : index
    %c0_11 = arith.constant 0 : index
    %11 = vector.load %arg5[%c0_9, %c0_10, %c0_11] : memref<8x128x128xbf16, #tpu.memory_space<vmem>>, vector<1x128x128xbf16>
    %12 = vector.shape_cast %11 : vector<1x128x128xbf16> to vector<128x128xbf16>
    %cst_12 = arith.constant dense<0.000000e+00> : vector<128x128xf32>
    %13 = tpu.matmul %10, %12, %cst_12 {dimension_numbers = #tpu.dot_dimension_numbers<[1], [0], [0], [1], [0, 0, 1, 1], [], []>} : vector<128x128xbf16>, vector<128x128xbf16>, vector<128x128xf32> -> vector<128x128xf32>
    %14 = arith.truncf %13 : vector<128x128xf32> to vector<128x128xbf16>
    %cst_13 = arith.constant dense<0.000000e+00> : vector<128x128xf32>
    %15 = tpu.matmul %9, %14, %cst_13 {dimension_numbers = #tpu.dot_dimension_numbers<[1], [0], [0], [1], [0, 0, 1, 1], [], []>} : vector<128x128xbf16>, vector<128x128xbf16>, vector<128x128xf32> -> vector<128x128xf32>
    %c0_14 = arith.constant 0 : index
    %c0_15 = arith.constant 0 : index
    %c0_16 = arith.constant 0 : index
    %16 = vector.load %arg6[%c0_14, %c0_15, %c0_16] : memref<8x1x128xf32, #tpu.memory_space<vmem>>, vector<1x1x128xf32>
    %17 = vector.shape_cast %16 : vector<1x1x128xf32> to vector<1x128xf32>
    %18 = vector.broadcast %17 : vector<1x128xf32> to vector<128x128xf32>
    %19 = arith.addf %15, %18 : vector<128x128xf32>
    %cst_17 = arith.constant 0.000000e+00 : f32
    %20 = vector.broadcast %cst_17 : f32 to vector<128x128xf32>
    %21 = arith.maximumf %19, %20 : vector<128x128xf32>
    %c0_18 = arith.constant 0 : index
    %22 = memref.load %arg0[%c0_18] : memref<8xf32, #tpu.memory_space<smem>>
    %23 = vector.broadcast %22 : f32 to vector<128x128xf32>
    %24 = arith.mulf %21, %23 : vector<128x128xf32>
    %25 = arith.addf %7, %24 : vector<128x128xf32>
    %c0_19 = arith.constant 0 : index
    %c0_20 = arith.constant 0 : index
    %c0_21 = arith.constant 0 : index
    %26 = vector.load %arg4[%c0_19, %c0_20, %c0_21] : memref<2x128x128xbf16, #tpu.memory_space<vmem>>, vector<1x128x128xbf16>
    %27 = vector.shape_cast %26 : vector<1x128x128xbf16> to vector<128x128xbf16>
    %28 = arith.truncf %21 : vector<128x128xf32> to vector<128x128xbf16>
    %c1 = arith.constant 1 : index
    %c0_22 = arith.constant 0 : index
    %c0_23 = arith.constant 0 : index
    %29 = vector.load %arg5[%c1, %c0_22, %c0_23] : memref<8x128x128xbf16, #tpu.memory_space<vmem>>, vector<1x128x128xbf16>
    %30 = vector.shape_cast %29 : vector<1x128x128xbf16> to vector<128x128xbf16>
    %cst_24 = arith.constant dense<0.000000e+00> : vector<128x128xf32>
    %31 = tpu.matmul %28, %30, %cst_24 {dimension_numbers = #tpu.dot_dimension_numbers<[1], [0], [0], [1], [0, 0, 1, 1], [], []>} : vector<128x128xbf16>, vector<128x128xbf16>, vector<128x128xf32> -> vector<128x128xf32>
    %32 = arith.truncf %31 : vector<128x128xf32> to vector<128x128xbf16>
    %cst_25 = arith.constant dense<0.000000e+00> : vector<128x128xf32>
    %33 = tpu.matmul %27, %32, %cst_25 {dimension_numbers = #tpu.dot_dimension_numbers<[1], [0], [0], [1], [0, 0, 1, 1], [], []>} : vector<128x128xbf16>, vector<128x128xbf16>, vector<128x128xf32> -> vector<128x128xf32>
    %c1_26 = arith.constant 1 : index
    %c0_27 = arith.constant 0 : index
    %c0_28 = arith.constant 0 : index
    %34 = vector.load %arg6[%c1_26, %c0_27, %c0_28] : memref<8x1x128xf32, #tpu.memory_space<vmem>>, vector<1x1x128xf32>
    %35 = vector.shape_cast %34 : vector<1x1x128xf32> to vector<1x128xf32>
    %36 = vector.broadcast %35 : vector<1x128xf32> to vector<128x128xf32>
    %37 = arith.addf %33, %36 : vector<128x128xf32>
    %cst_29 = arith.constant 0.000000e+00 : f32
    %38 = vector.broadcast %cst_29 : f32 to vector<128x128xf32>
    %39 = arith.maximumf %37, %38 : vector<128x128xf32>
    %c1_30 = arith.constant 1 : index
    %40 = memref.load %arg0[%c1_30] : memref<8xf32, #tpu.memory_space<smem>>
    %41 = vector.broadcast %40 : f32 to vector<128x128xf32>
    %42 = arith.mulf %39, %41 : vector<128x128xf32>
    %43 = arith.addf %25, %42 : vector<128x128xf32>
    %c0_31 = arith.constant 0 : index
    %c0_32 = arith.constant 0 : index
    %c0_33 = arith.constant 0 : index
    %44 = vector.load %arg4[%c0_31, %c0_32, %c0_33] : memref<2x128x128xbf16, #tpu.memory_space<vmem>>, vector<1x128x128xbf16>
    %45 = vector.shape_cast %44 : vector<1x128x128xbf16> to vector<128x128xbf16>
    %46 = arith.truncf %39 : vector<128x128xf32> to vector<128x128xbf16>
    %c2 = arith.constant 2 : index
    %c0_34 = arith.constant 0 : index
    %c0_35 = arith.constant 0 : index
    %47 = vector.load %arg5[%c2, %c0_34, %c0_35] : memref<8x128x128xbf16, #tpu.memory_space<vmem>>, vector<1x128x128xbf16>
    %48 = vector.shape_cast %47 : vector<1x128x128xbf16> to vector<128x128xbf16>
    %cst_36 = arith.constant dense<0.000000e+00> : vector<128x128xf32>
    %49 = tpu.matmul %46, %48, %cst_36 {dimension_numbers = #tpu.dot_dimension_numbers<[1], [0], [0], [1], [0, 0, 1, 1], [], []>} : vector<128x128xbf16>, vector<128x128xbf16>, vector<128x128xf32> -> vector<128x128xf32>
    %50 = arith.truncf %49 : vector<128x128xf32> to vector<128x128xbf16>
    %cst_37 = arith.constant dense<0.000000e+00> : vector<128x128xf32>
    %51 = tpu.matmul %45, %50, %cst_37 {dimension_numbers = #tpu.dot_dimension_numbers<[1], [0], [0], [1], [0, 0, 1, 1], [], []>} : vector<128x128xbf16>, vector<128x128xbf16>, vector<128x128xf32> -> vector<128x128xf32>
    %c2_38 = arith.constant 2 : index
    %c0_39 = arith.constant 0 : index
    %c0_40 = arith.constant 0 : index
    %52 = vector.load %arg6[%c2_38, %c0_39, %c0_40] : memref<8x1x128xf32, #tpu.memory_space<vmem>>, vector<1x1x128xf32>
    %53 = vector.shape_cast %52 : vector<1x1x128xf32> to vector<1x128xf32>
    %54 = vector.broadcast %53 : vector<1x128xf32> to vector<128x128xf32>
    %55 = arith.addf %51, %54 : vector<128x128xf32>
    %cst_41 = arith.constant 0.000000e+00 : f32
    %56 = vector.broadcast %cst_41 : f32 to vector<128x128xf32>
    %57 = arith.maximumf %55, %56 : vector<128x128xf32>
    %c2_42 = arith.constant 2 : index
    %58 = memref.load %arg0[%c2_42] : memref<8xf32, #tpu.memory_space<smem>>
    %59 = vector.broadcast %58 : f32 to vector<128x128xf32>
    %60 = arith.mulf %57, %59 : vector<128x128xf32>
    %61 = arith.addf %43, %60 : vector<128x128xf32>
    %c0_43 = arith.constant 0 : index
    %c0_44 = arith.constant 0 : index
    %c0_45 = arith.constant 0 : index
    %62 = vector.load %arg4[%c0_43, %c0_44, %c0_45] : memref<2x128x128xbf16, #tpu.memory_space<vmem>>, vector<1x128x128xbf16>
    %63 = vector.shape_cast %62 : vector<1x128x128xbf16> to vector<128x128xbf16>
    %64 = arith.truncf %57 : vector<128x128xf32> to vector<128x128xbf16>
    %c3 = arith.constant 3 : index
    %c0_46 = arith.constant 0 : index
    %c0_47 = arith.constant 0 : index
    %65 = vector.load %arg5[%c3, %c0_46, %c0_47] : memref<8x128x128xbf16, #tpu.memory_space<vmem>>, vector<1x128x128xbf16>
    %66 = vector.shape_cast %65 : vector<1x128x128xbf16> to vector<128x128xbf16>
    %cst_48 = arith.constant dense<0.000000e+00> : vector<128x128xf32>
    %67 = tpu.matmul %64, %66, %cst_48 {dimension_numbers = #tpu.dot_dimension_numbers<[1], [0], [0], [1], [0, 0, 1, 1], [], []>} : vector<128x128xbf16>, vector<128x128xbf16>, vector<128x128xf32> -> vector<128x128xf32>
    %68 = arith.truncf %67 : vector<128x128xf32> to vector<128x128xbf16>
    %cst_49 = arith.constant dense<0.000000e+00> : vector<128x128xf32>
    %69 = tpu.matmul %63, %68, %cst_49 {dimension_numbers = #tpu.dot_dimension_numbers<[1], [0], [0], [1], [0, 0, 1, 1], [], []>} : vector<128x128xbf16>, vector<128x128xbf16>, vector<128x128xf32> -> vector<128x128xf32>
    %c3_50 = arith.constant 3 : index
    %c0_51 = arith.constant 0 : index
    %c0_52 = arith.constant 0 : index
    %70 = vector.load %arg6[%c3_50, %c0_51, %c0_52] : memref<8x1x128xf32, #tpu.memory_space<vmem>>, vector<1x1x128xf32>
    %71 = vector.shape_cast %70 : vector<1x1x128xf32> to vector<1x128xf32>
    %72 = vector.broadcast %71 : vector<1x128xf32> to vector<128x128xf32>
    %73 = arith.addf %69, %72 : vector<128x128xf32>
    %cst_53 = arith.constant 0.000000e+00 : f32
    %74 = vector.broadcast %cst_53 : f32 to vector<128x128xf32>
    %75 = arith.maximumf %73, %74 : vector<128x128xf32>
    %c3_54 = arith.constant 3 : index
    %76 = memref.load %arg0[%c3_54] : memref<8xf32, #tpu.memory_space<smem>>
    %77 = vector.broadcast %76 : f32 to vector<128x128xf32>
    %78 = arith.mulf %75, %77 : vector<128x128xf32>
    %79 = arith.addf %61, %78 : vector<128x128xf32>
    %c1_55 = arith.constant 1 : index
    %c0_56 = arith.constant 0 : index
    %c0_57 = arith.constant 0 : index
    %80 = vector.load %arg4[%c1_55, %c0_56, %c0_57] : memref<2x128x128xbf16, #tpu.memory_space<vmem>>, vector<1x128x128xbf16>
    %81 = vector.shape_cast %80 : vector<1x128x128xbf16> to vector<128x128xbf16>
    %82 = arith.truncf %75 : vector<128x128xf32> to vector<128x128xbf16>
    %c4 = arith.constant 4 : index
    %c0_58 = arith.constant 0 : index
    %c0_59 = arith.constant 0 : index
    %83 = vector.load %arg5[%c4, %c0_58, %c0_59] : memref<8x128x128xbf16, #tpu.memory_space<vmem>>, vector<1x128x128xbf16>
    %84 = vector.shape_cast %83 : vector<1x128x128xbf16> to vector<128x128xbf16>
    %cst_60 = arith.constant dense<0.000000e+00> : vector<128x128xf32>
    %85 = tpu.matmul %82, %84, %cst_60 {dimension_numbers = #tpu.dot_dimension_numbers<[1], [0], [0], [1], [0, 0, 1, 1], [], []>} : vector<128x128xbf16>, vector<128x128xbf16>, vector<128x128xf32> -> vector<128x128xf32>
    %86 = arith.truncf %85 : vector<128x128xf32> to vector<128x128xbf16>
    %cst_61 = arith.constant dense<0.000000e+00> : vector<128x128xf32>
    %87 = tpu.matmul %81, %86, %cst_61 {dimension_numbers = #tpu.dot_dimension_numbers<[1], [0], [0], [1], [0, 0, 1, 1], [], []>} : vector<128x128xbf16>, vector<128x128xbf16>, vector<128x128xf32> -> vector<128x128xf32>
    %c4_62 = arith.constant 4 : index
    %c0_63 = arith.constant 0 : index
    %c0_64 = arith.constant 0 : index
    %88 = vector.load %arg6[%c4_62, %c0_63, %c0_64] : memref<8x1x128xf32, #tpu.memory_space<vmem>>, vector<1x1x128xf32>
    %89 = vector.shape_cast %88 : vector<1x1x128xf32> to vector<1x128xf32>
    %90 = vector.broadcast %89 : vector<1x128xf32> to vector<128x128xf32>
    %91 = arith.addf %87, %90 : vector<128x128xf32>
    %cst_65 = arith.constant 0.000000e+00 : f32
    %92 = vector.broadcast %cst_65 : f32 to vector<128x128xf32>
    %93 = arith.maximumf %91, %92 : vector<128x128xf32>
    %c4_66 = arith.constant 4 : index
    %94 = memref.load %arg0[%c4_66] : memref<8xf32, #tpu.memory_space<smem>>
    %95 = vector.broadcast %94 : f32 to vector<128x128xf32>
    %96 = arith.mulf %93, %95 : vector<128x128xf32>
    %97 = arith.addf %79, %96 : vector<128x128xf32>
    %c1_67 = arith.constant 1 : index
    %c0_68 = arith.constant 0 : index
    %c0_69 = arith.constant 0 : index
    %98 = vector.load %arg4[%c1_67, %c0_68, %c0_69] : memref<2x128x128xbf16, #tpu.memory_space<vmem>>, vector<1x128x128xbf16>
    %99 = vector.shape_cast %98 : vector<1x128x128xbf16> to vector<128x128xbf16>
    %100 = arith.truncf %93 : vector<128x128xf32> to vector<128x128xbf16>
    %c5 = arith.constant 5 : index
    %c0_70 = arith.constant 0 : index
    %c0_71 = arith.constant 0 : index
    %101 = vector.load %arg5[%c5, %c0_70, %c0_71] : memref<8x128x128xbf16, #tpu.memory_space<vmem>>, vector<1x128x128xbf16>
    %102 = vector.shape_cast %101 : vector<1x128x128xbf16> to vector<128x128xbf16>
    %cst_72 = arith.constant dense<0.000000e+00> : vector<128x128xf32>
    %103 = tpu.matmul %100, %102, %cst_72 {dimension_numbers = #tpu.dot_dimension_numbers<[1], [0], [0], [1], [0, 0, 1, 1], [], []>} : vector<128x128xbf16>, vector<128x128xbf16>, vector<128x128xf32> -> vector<128x128xf32>
    %104 = arith.truncf %103 : vector<128x128xf32> to vector<128x128xbf16>
    %cst_73 = arith.constant dense<0.000000e+00> : vector<128x128xf32>
    %105 = tpu.matmul %99, %104, %cst_73 {dimension_numbers = #tpu.dot_dimension_numbers<[1], [0], [0], [1], [0, 0, 1, 1], [], []>} : vector<128x128xbf16>, vector<128x128xbf16>, vector<128x128xf32> -> vector<128x128xf32>
    %c5_74 = arith.constant 5 : index
    %c0_75 = arith.constant 0 : index
    %c0_76 = arith.constant 0 : index
    %106 = vector.load %arg6[%c5_74, %c0_75, %c0_76] : memref<8x1x128xf32, #tpu.memory_space<vmem>>, vector<1x1x128xf32>
    %107 = vector.shape_cast %106 : vector<1x1x128xf32> to vector<1x128xf32>
    %108 = vector.broadcast %107 : vector<1x128xf32> to vector<128x128xf32>
    %109 = arith.addf %105, %108 : vector<128x128xf32>
    %cst_77 = arith.constant 0.000000e+00 : f32
    %110 = vector.broadcast %cst_77 : f32 to vector<128x128xf32>
    %111 = arith.maximumf %109, %110 : vector<128x128xf32>
    %c5_78 = arith.constant 5 : index
    %112 = memref.load %arg0[%c5_78] : memref<8xf32, #tpu.memory_space<smem>>
    %113 = vector.broadcast %112 : f32 to vector<128x128xf32>
    %114 = arith.mulf %111, %113 : vector<128x128xf32>
    %115 = arith.addf %97, %114 : vector<128x128xf32>
    %c1_79 = arith.constant 1 : index
    %c0_80 = arith.constant 0 : index
    %c0_81 = arith.constant 0 : index
    %116 = vector.load %arg4[%c1_79, %c0_80, %c0_81] : memref<2x128x128xbf16, #tpu.memory_space<vmem>>, vector<1x128x128xbf16>
    %117 = vector.shape_cast %116 : vector<1x128x128xbf16> to vector<128x128xbf16>
    %118 = arith.truncf %111 : vector<128x128xf32> to vector<128x128xbf16>
    %c6 = arith.constant 6 : index
    %c0_82 = arith.constant 0 : index
    %c0_83 = arith.constant 0 : index
    %119 = vector.load %arg5[%c6, %c0_82, %c0_83] : memref<8x128x128xbf16, #tpu.memory_space<vmem>>, vector<1x128x128xbf16>
    %120 = vector.shape_cast %119 : vector<1x128x128xbf16> to vector<128x128xbf16>
    %cst_84 = arith.constant dense<0.000000e+00> : vector<128x128xf32>
    %121 = tpu.matmul %118, %120, %cst_84 {dimension_numbers = #tpu.dot_dimension_numbers<[1], [0], [0], [1], [0, 0, 1, 1], [], []>} : vector<128x128xbf16>, vector<128x128xbf16>, vector<128x128xf32> -> vector<128x128xf32>
    %122 = arith.truncf %121 : vector<128x128xf32> to vector<128x128xbf16>
    %cst_85 = arith.constant dense<0.000000e+00> : vector<128x128xf32>
    %123 = tpu.matmul %117, %122, %cst_85 {dimension_numbers = #tpu.dot_dimension_numbers<[1], [0], [0], [1], [0, 0, 1, 1], [], []>} : vector<128x128xbf16>, vector<128x128xbf16>, vector<128x128xf32> -> vector<128x128xf32>
    %c6_86 = arith.constant 6 : index
    %c0_87 = arith.constant 0 : index
    %c0_88 = arith.constant 0 : index
    %124 = vector.load %arg6[%c6_86, %c0_87, %c0_88] : memref<8x1x128xf32, #tpu.memory_space<vmem>>, vector<1x1x128xf32>
    %125 = vector.shape_cast %124 : vector<1x1x128xf32> to vector<1x128xf32>
    %126 = vector.broadcast %125 : vector<1x128xf32> to vector<128x128xf32>
    %127 = arith.addf %123, %126 : vector<128x128xf32>
    %cst_89 = arith.constant 0.000000e+00 : f32
    %128 = vector.broadcast %cst_89 : f32 to vector<128x128xf32>
    %129 = arith.maximumf %127, %128 : vector<128x128xf32>
    %c6_90 = arith.constant 6 : index
    %130 = memref.load %arg0[%c6_90] : memref<8xf32, #tpu.memory_space<smem>>
    %131 = vector.broadcast %130 : f32 to vector<128x128xf32>
    %132 = arith.mulf %129, %131 : vector<128x128xf32>
    %133 = arith.addf %115, %132 : vector<128x128xf32>
    %c1_91 = arith.constant 1 : index
    %c0_92 = arith.constant 0 : index
    %c0_93 = arith.constant 0 : index
    %134 = vector.load %arg4[%c1_91, %c0_92, %c0_93] : memref<2x128x128xbf16, #tpu.memory_space<vmem>>, vector<1x128x128xbf16>
    %135 = vector.shape_cast %134 : vector<1x128x128xbf16> to vector<128x128xbf16>
    %136 = arith.truncf %129 : vector<128x128xf32> to vector<128x128xbf16>
    %c7 = arith.constant 7 : index
    %c0_94 = arith.constant 0 : index
    %c0_95 = arith.constant 0 : index
    %137 = vector.load %arg5[%c7, %c0_94, %c0_95] : memref<8x128x128xbf16, #tpu.memory_space<vmem>>, vector<1x128x128xbf16>
    %138 = vector.shape_cast %137 : vector<1x128x128xbf16> to vector<128x128xbf16>
    %cst_96 = arith.constant dense<0.000000e+00> : vector<128x128xf32>
    %139 = tpu.matmul %136, %138, %cst_96 {dimension_numbers = #tpu.dot_dimension_numbers<[1], [0], [0], [1], [0, 0, 1, 1], [], []>} : vector<128x128xbf16>, vector<128x128xbf16>, vector<128x128xf32> -> vector<128x128xf32>
    %140 = arith.truncf %139 : vector<128x128xf32> to vector<128x128xbf16>
    %cst_97 = arith.constant dense<0.000000e+00> : vector<128x128xf32>
    %141 = tpu.matmul %135, %140, %cst_97 {dimension_numbers = #tpu.dot_dimension_numbers<[1], [0], [0], [1], [0, 0, 1, 1], [], []>} : vector<128x128xbf16>, vector<128x128xbf16>, vector<128x128xf32> -> vector<128x128xf32>
    %c7_98 = arith.constant 7 : index
    %c0_99 = arith.constant 0 : index
    %c0_100 = arith.constant 0 : index
    %142 = vector.load %arg6[%c7_98, %c0_99, %c0_100] : memref<8x1x128xf32, #tpu.memory_space<vmem>>, vector<1x1x128xf32>
    %143 = vector.shape_cast %142 : vector<1x1x128xf32> to vector<1x128xf32>
    %144 = vector.broadcast %143 : vector<1x128xf32> to vector<128x128xf32>
    %145 = arith.addf %141, %144 : vector<128x128xf32>
    %cst_101 = arith.constant 0.000000e+00 : f32
    %146 = vector.broadcast %cst_101 : f32 to vector<128x128xf32>
    %147 = arith.maximumf %145, %146 : vector<128x128xf32>
    %c7_102 = arith.constant 7 : index
    %148 = memref.load %arg0[%c7_102] : memref<8xf32, #tpu.memory_space<smem>>
    %149 = vector.broadcast %148 : f32 to vector<128x128xf32>
    %150 = arith.mulf %147, %149 : vector<128x128xf32>
    %151 = arith.addf %133, %150 : vector<128x128xf32>
    %152 = arith.truncf %151 : vector<128x128xf32> to vector<128x128xbf16>
    %c0_103 = arith.constant 0 : index
    %c0_104 = arith.constant 0 : index
    %153 = vector.load %arg7[%c0_103, %c0_104] : memref<128x16xbf16, #tpu.memory_space<vmem>>, vector<128x16xbf16>
    %cst_105 = arith.constant dense<0.000000e+00> : vector<128x16xf32>
    %154 = tpu.matmul %152, %153, %cst_105 {dimension_numbers = #tpu.dot_dimension_numbers<[1], [0], [0], [1], [0, 0, 1, 1], [], []>} : vector<128x128xbf16>, vector<128x16xbf16>, vector<128x16xf32> -> vector<128x16xf32>
    %c0_106 = arith.constant 0 : index
    %c0_107 = arith.constant 0 : index
    %155 = vector.load %arg8[%c0_106, %c0_107] : memref<1x16xf32, #tpu.memory_space<vmem>>, vector<1x16xf32>
    %156 = vector.broadcast %155 : vector<1x16xf32> to vector<128x16xf32>
    %157 = arith.addf %154, %156 : vector<128x16xf32>
    %cst_108 = arith.constant dense<0xFF800000> : vector<128xf32>
    %158 = vector.multi_reduction <maximumf>, %157, %cst_108 [1] : vector<128x16xf32> to vector<128xf32>
    %159 = vector.shape_cast %158 : vector<128xf32> to vector<128x1xf32>
    %160 = vector.broadcast %159 : vector<128x1xf32> to vector<128x16xf32>
    %161 = arith.subf %157, %160 : vector<128x16xf32>
    %162 = math.exp %161 : vector<128x16xf32>
    %cst_109 = arith.constant dense<0.000000e+00> : vector<128xf32>
    %163 = vector.multi_reduction <add>, %162, %cst_109 [1] : vector<128x16xf32> to vector<128xf32>
    %164 = vector.shape_cast %163 : vector<128xf32> to vector<128x1xf32>
    %165 = math.log %164 : vector<128x1xf32>
    %166 = arith.addf %165, %159 : vector<128x1xf32>
    %167 = vector.broadcast %166 : vector<128x1xf32> to vector<128x16xf32>
    %168 = arith.subf %157, %167 : vector<128x16xf32>
    %c0_110 = arith.constant 0 : index
    %c0_111 = arith.constant 0 : index
    %169 = vector.load %arg9[%c0_110, %c0_111] : memref<128x16xf32, #tpu.memory_space<vmem>>, vector<128x16xf32>
    tpu.vector_store %arg9[%c0_110, %c0_111], %168 {strides = array<i32>} : memref<128x16xf32, #tpu.memory_space<vmem>>, vector<128x16xf32>,
    return
  }
}

</mosaic_0001>

<llo_original>
// kernel: gcn_res_forward.1
$region0: #{gcn_res_forward.1}
  #allocation0 [shape = 'u32[]', space=smem, size = 0x4, offset = 0x4, fixed_abs, tag = 'smem constant byte address 0x4 - core index']
  #allocation1 [shape = 'u32[72,128]{1,0:T(1,128)}', space=vmem, size = 0x9000, scoped, tag = 'internal scratch']
  %s0 = inlined_call_operand.vmem [shape: f32[8], index: 0, kind: input, shape index: {}]
  %s1 = inlined_call_operand.vmem [shape: f32[128,8], index: 1, kind: input, shape index: {}]
  %s2 = inlined_call_operand.vmem [shape: bf16[8,128], index: 2, kind: input, shape index: {}]
  %s3 = inlined_call_operand.vmem [shape: f32[1,128], index: 3, kind: input, shape index: {}]
  %s4 = inlined_call_operand.vmem [shape: bf16[2,128,128], index: 4, kind: input, shape index: {}]
  %s5 = inlined_call_operand.vmem [shape: bf16[8,128,128], index: 5, kind: input, shape index: {}]
  %s6 = inlined_call_operand.vmem [shape: f32[8,1,128], index: 6, kind: input, shape index: {}]
  %s7 = inlined_call_operand.vmem [shape: bf16[128,16], index: 7, kind: input, shape index: {}]
  %s8 = inlined_call_operand.vmem [shape: f32[1,16], index: 8, kind: input, shape index: {}]
  %s9 = inlined_call_operand.vmem [shape: f32[128,16], index: 9, kind: output, shape index: {}]
  %s10 = sld [smem:[#allocation0]]
  $region50: #{gcn_res_forward.1} parent=0
    _
  %s12 = ssub.s32 1, %s10
  %s13 = scalar_select 0, %s12, %s10
  $region1: #{gcn_res_forward.1} parent=0
    #allocation2 [shape = 'u8[512]{0}', space=smem, size = 0x200, scoped, tag = 'input window, operand 0, single buffered']
    #allocation3 [shape = 's32[1]{0}', space=sflag, size = 0x4, scoped, tag = 'scoped memory for gcn_res_forward.1']
    %14 = vsyncpa [#allocation3], 0
    // Predicated region
    $region2: #{gcn_res_forward.1} parent=1 // pred_check
      _
    $region3: #{gcn_res_forward.1} parent=1 // pred_check_branch
      %16 = sbr.rel (0) target = $region5
    $region4: #{gcn_res_forward.1} parent=1 // pred_region
      %18 = vsyncadd [#allocation3], 0
      %s20 = sshll.u32 %s0, 4
      %s21 = int_to_ptr.vmem [resolvable:$true] %s20
      %23 = dma.vmem_to_smem %s21, 16, [#allocation2], [#allocation3]
    $region5: #{gcn_res_forward.1} parent=1 // pred_fallthru
      _
    // Predicated region
    $region6: #{gcn_res_forward.1} parent=1 // pred_check
      _
    $region7: #{gcn_res_forward.1} parent=1 // pred_check_branch
      %25 = sbr.rel (0) target = $region9
    $region8: #{gcn_res_forward.1} parent=1 // pred_region
      _
    $region9: #{gcn_res_forward.1} parent=1 // pred_fallthru
      _
    // Predicated region
    $region10: #{gcn_res_forward.1} parent=1 // pred_check
      _
    $region11: #{gcn_res_forward.1} parent=1 // pred_check_branch
      %27 = sbr.rel (0) target = $region13
    $region12: #{gcn_res_forward.1} parent=1 // pred_region
      _
    $region13: #{gcn_res_forward.1} parent=1 // pred_fallthru
      _
    // Predicated region
    $region14: #{gcn_res_forward.1} parent=1 // pred_check
      _
    $region15: #{gcn_res_forward.1} parent=1 // pred_check_branch
      %29 = sbr.rel (0) target = $region17
    $region16: #{gcn_res_forward.1} parent=1 // pred_region
      _
    $region17: #{gcn_res_forward.1} parent=1 // pred_fallthru
      _
    // Predicated region
    $region18: #{gcn_res_forward.1} parent=1 // pred_check
      _
    $region19: #{gcn_res_forward.1} parent=1 // pred_check_branch
      %31 = sbr.rel (0) target = $region21
    $region20: #{gcn_res_forward.1} parent=1 // pred_region
      _
    $region21: #{gcn_res_forward.1} parent=1 // pred_fallthru
      _
    // Predicated region
    $region22: #{gcn_res_forward.1} parent=1 // pred_check
      _
    $region23: #{gcn_res_forward.1} parent=1 // pred_check_branch
      %33 = sbr.rel (0) target = $region25
    $region24: #{gcn_res_forward.1} parent=1 // pred_region
      _
    $region25: #{gcn_res_forward.1} parent=1 // pred_fallthru
      _
    // Predicated region
    $region26: #{gcn_res_forward.1} parent=1 // pred_check
      _
    $region27: #{gcn_res_forward.1} parent=1 // pred_check_branch
      %35 = sbr.rel (0) target = $region29
    $region28: #{gcn_res_forward.1} parent=1 // pred_region
      _
    $region29: #{gcn_res_forward.1} parent=1 // pred_fallthru
      _
    // Predicated region
    $region30: #{gcn_res_forward.1} parent=1 // pred_check
      _
    $region31: #{gcn_res_forward.1} parent=1 // pred_check_branch
      %37 = sbr.rel (0) target = $region33
    $region32: #{gcn_res_forward.1} parent=1 // pred_region
      _
    $region33: #{gcn_res_forward.1} parent=1 // pred_fallthru
      _
    // Predicated region
    $region34: #{gcn_res_forward.1} parent=1 // pred_check
      _
    $region35: #{gcn_res_forward.1} parent=1 // pred_check_branch
      %39 = sbr.rel (0) target = $region37
    $region36: #{gcn_res_forward.1} parent=1 // pred_region
      _
    $region37: #{gcn_res_forward.1} parent=1 // pred_fallthru
      _
    // Predicated region
    $region38: #{gcn_res_forward.1} parent=1 // pred_check
      _
    $region39: #{gcn_res_forward.1} parent=1 // pred_check_branch
      %41 = sbr.rel (0) target = $region41
    $region40: #{gcn_res_forward.1} parent=1 // pred_region
      %43 = dma.done [#allocation3], 16
    $region41: #{gcn_res_forward.1} parent=1 // pred_fallthru
      _
    %44 = sfence
    %v46 = vld [vmem:[%s1] sm:$0xff]
    %v47 = vld [vmem:[%s1 + $0x8] sm:$0xff]
    %v48 = vld [vmem:[%s1 + $0x10] sm:$0xff]
    %v49 = vld [vmem:[%s1 + $0x18] sm:$0xff]
    %v50 = vld [vmem:[%s1 + $0x20] sm:$0xff]
    %v51 = vld [vmem:[%s1 + $0x28] sm:$0xff]
    %v52 = vld [vmem:[%s1 + $0x30] sm:$0xff]
    %v53 = vld [vmem:[%s1 + $0x38] sm:$0xff]
    %v54 = vld [vmem:[%s1 + $0x40] sm:$0xff]
    %v55 = vld [vmem:[%s1 + $0x48] sm:$0xff]
    %v56 = vld [vmem:[%s1 + $0x50] sm:$0xff]
    %v57 = vld [vmem:[%s1 + $0x58] sm:$0xff]
    %v58 = vld [vmem:[%s1 + $0x60] sm:$0xff]
    %v59 = vld [vmem:[%s1 + $0x68] sm:$0xff]
    %v60 = vld [vmem:[%s1 + $0x70] sm:$0xff]
    %v61 = vld [vmem:[%s1 + $0x78] sm:$0xff]
    %v62 = vpack.c.bf16 %v47, %v46
    %v63 = vpack.c.bf16 %v49, %v48
    %v64 = vpack.c.bf16 %v51, %v50
    %v65 = vpack.c.bf16 %v53, %v52
    %v66 = vpack.c.bf16 %v55, %v54
    %v67 = vpack.c.bf16 %v57, %v56
    %v68 = vpack.c.bf16 %v59, %v58
    %v69 = vpack.c.bf16 %v61, %v60
    %v70 = vld [vmem:[%s2] sm:$0xf]
    %v71 = vld [vmem:[%s3] sm:$0x1]
    %v73 = vperm.slane %v71, 0
    %vm75 = vcmask 64512
    %v77 = vsel %vm75, %v62, 0
    %v80 = vsel %vm75, %v63, 0
    %v83 = vsel %vm75, %v64, 0
    %v86 = vsel %vm75, %v65, 0
    %v89 = vsel %vm75, %v66, 0
    %v92 = vsel %vm75, %v67, 0
    %v95 = vsel %vm75, %v68, 0
    %v98 = vsel %vm75, %v69, 0
    %vm100 = vcmask 1043456
    %v102 = vsel %vm100, %v70, 0
    %104 = vmatpush.bf16.msra.mxu0 0
    %105 = vmatpush.bf16.msra.mxu0 0
    %106 = vmatpush.bf16.msra.mxu0 0
    %107 = vmatpush.bf16.msra.mxu0 0
    %108 = vmatpush.bf16.msra.mxu0 0
    %109 = vmatpush.bf16.msra.mxu0 0
    %110 = vmatpush.bf16.msra.mxu0 0
    %111 = vmatpush.bf16.msra.mxu0 %v102
    %112 = vmatmul.bf16.gmra.mxu0 %v77
    %v113 = vpop.f32.mrf.mxu0
    %v114 = vadd.f32 %v73, %v113
    %v115 = vpop.f32.mrf.mxu0
    %v116 = vadd.f32 %v73, %v115
    %117 = vmatmul.bf16.gmra.mxu0 %v80
    %v118 = vpop.f32.mrf.mxu0
    %v119 = vadd.f32 %v73, %v118
    %v120 = vpop.f32.mrf.mxu0
    %v121 = vadd.f32 %v73, %v120
    %122 = vmatmul.bf16.gmra.mxu0 %v83
    %v123 = vpop.f32.mrf.mxu0
    %v124 = vadd.f32 %v73, %v123
    %v125 = vpop.f32.mrf.mxu0
    %v126 = vadd.f32 %v73, %v125
    %127 = vmatmul.bf16.gmra.mxu0 %v86
    %v128 = vpop.f32.mrf.mxu0
    %v129 = vadd.f32 %v73, %v128
    %v130 = vpop.f32.mrf.mxu0
    %v131 = vadd.f32 %v73, %v130
    %132 = vmatmul.bf16.gmra.mxu0 %v89
    %v133 = vpop.f32.mrf.mxu0
    %v134 = vadd.f32 %v73, %v133
    %v135 = vpop.f32.mrf.mxu0
    %v136 = vadd.f32 %v73, %v135
    %137 = vmatmul.bf16.gmra.mxu0 %v92
    %v138 = vpop.f32.mrf.mxu0
    %v139 = vadd.f32 %v73, %v138
    %v140 = vpop.f32.mrf.mxu0
    %v141 = vadd.f32 %v73, %v140
    %142 = vmatmul.bf16.gmra.mxu0 %v95
    %v143 = vpop.f32.mrf.mxu0
    %v144 = vadd.f32 %v73, %v143
    %v145 = vpop.f32.mrf.mxu0
    %v146 = vadd.f32 %v73, %v145
    %147 = vmatmul.bf16.gmra.mxu0 %v98
    %v148 = vpop.f32.mrf.mxu0
    %v149 = vadd.f32 %v73, %v148
    %v150 = vpop.f32.mrf.mxu0
    %v151 = vadd.f32 %v73, %v150
    %152 = vdwg.mxu0
    %v153 = vld [vmem:[%s4] sm:$0xf]
    %v154 = vld [vmem:[%s4 + $0x4] sm:$0xf]
    %v155 = vld [vmem:[%s4 + $0x8] sm:$0xf]
    %v156 = vld [vmem:[%s4 + $0xc] sm:$0xf]
    %v157 = vld [vmem:[%s4 + $0x10] sm:$0xf]
    %v158 = vld [vmem:[%s4 + $0x14] sm:$0xf]
    %v159 = vld [vmem:[%s4 + $0x18] sm:$0xf]
    %v160 = vld [vmem:[%s4 + $0x1c] sm:$0xf]
    %v161 = vld [vmem:[%s4 + $0x20] sm:$0xf]
    %v162 = vld [vmem:[%s4 + $0x24] sm:$0xf]
    %v163 = vld [vmem:[%s4 + $0x28] sm:$0xf]
    %v164 = vld [vmem:[%s4 + $0x2c] sm:$0xf]
    %v165 = vld [vmem:[%s4 + $0x30] sm:$0xf]
    %v166 = vld [vmem:[%s4 + $0x34] sm:$0xf]
    %v167 = vld [vmem:[%s4 + $0x38] sm:$0xf]
    %v168 = vld [vmem:[%s4 + $0x3c] sm:$0xf]
    %v169 = vpack.c.bf16 %v116, %v114
    %v170 = vpack.c.bf16 %v121, %v119
    %v171 = vpack.c.bf16 %v126, %v124
    %v172 = vpack.c.bf16 %v131, %v129
    %v173 = vpack.c.bf16 %v136, %v134
    %v174 = vpack.c.bf16 %v141, %v139
    %v175 = vpack.c.bf16 %v146, %v144
    %v176 = vpack.c.bf16 %v151, %v149
    %v177 = vld [vmem:[%s5] sm:$0xf]
    %v178 = vld [vmem:[%s5 + $0x4] sm:$0xf]
    %v179 = vld [vmem:[%s5 + $0x8] sm:$0xf]
    %v180 = vld [vmem:[%s5 + $0xc] sm:$0xf]
    %v181 = vld [vmem:[%s5 + $0x10] sm:$0xf]
    %v182 = vld [vmem:[%s5 + $0x14] sm:$0xf]
    %v183 = vld [vmem:[%s5 + $0x18] sm:$0xf]
    %v184 = vld [vmem:[%s5 + $0x1c] sm:$0xf]
    %v185 = vld [vmem:[%s5 + $0x20] sm:$0xf]
    %v186 = vld [vmem:[%s5 + $0x24] sm:$0xf]
    %v187 = vld [vmem:[%s5 + $0x28] sm:$0xf]
    %v188 = vld [vmem:[%s5 + $0x2c] sm:$0xf]
    %v189 = vld [vmem:[%s5 + $0x30] sm:$0xf]
    %v190 = vld [vmem:[%s5 + $0x34] sm:$0xf]
    %v191 = vld [vmem:[%s5 + $0x38] sm:$0xf]
    %v192 = vld [vmem:[%s5 + $0x3c] sm:$0xf]
    %v209 = vunpack.c.l.b16 %v177
    %v210 = vunpack.c.l.b16 %v178
    %v211 = vunpack.c.l.b16 %v179
    %v212 = vunpack.c.l.b16 %v180
    %v213 = vunpack.c.l.b16 %v181
    %v214 = vunpack.c.l.b16 %v182
    %v215 = vunpack.c.l.b16 %v183
    %v216 = vunpack.c.l.b16 %v184
    %v217 = vunpack.c.l.b16 %v185
    %v218 = vunpack.c.l.b16 %v186
    %v219 = vunpack.c.l.b16 %v187
    %v220 = vunpack.c.l.b16 %v188
    %v221 = vunpack.c.l.b16 %v189
    %v222 = vunpack.c.l.b16 %v190
    %v223 = vunpack.c.l.b16 %v191
    %v224 = vunpack.c.l.b16 %v192
    %v225 = vpack.c.b16 %v210, %v209
    %v226 = vpack.c.b16 %v212, %v211
    %v227 = vpack.c.b16 %v214, %v213
    %v228 = vpack.c.b16 %v216, %v215
    %v229 = vpack.c.b16 %v218, %v217
    %v230 = vpack.c.b16 %v220, %v219
    %v231 = vpack.c.b16 %v222, %v221
    %v232 = vpack.c.b16 %v224, %v223
    %241 = vmatpush.bf16.msra.mxu0 %v232
    %242 = vmatpush.bf16.msra.mxu0 %v231
    %243 = vmatpush.bf16.msra.mxu0 %v230
    %244 = vmatpush.bf16.msra.mxu0 %v229
    %245 = vmatpush.bf16.msra.mxu0 %v228
    %246 = vmatpush.bf16.msra.mxu0 %v227
    %247 = vmatpush.bf16.msra.mxu0 %v226
    %248 = vmatpush.bf16.msra.mxu0 %v225
    %249 = vmatmul.bf16.gmra.mxu0 %v169
    %v250 = vpop.f32.mrf.mxu0
    %v251 = vadd.f32 0.0, %v250
    %v252 = vpop.f32.mrf.mxu0
    %v253 = vadd.f32 0.0, %v252
    %254 = vmatmul.bf16.gmra.mxu0 %v170
    %v255 = vpop.f32.mrf.mxu0
    %v256 = vadd.f32 0.0, %v255
    %v257 = vpop.f32.mrf.mxu0
    %v258 = vadd.f32 0.0, %v257
    %259 = vmatmul.bf16.gmra.mxu0 %v171
    %v260 = vpop.f32.mrf.mxu0
    %v261 = vadd.f32 0.0, %v260
    %v262 = vpop.f32.mrf.mxu0
    %v263 = vadd.f32 0.0, %v262
    %264 = vmatmul.bf16.gmra.mxu0 %v172
    %v265 = vpop.f32.mrf.mxu0
    %v266 = vadd.f32 0.0, %v265
    %v267 = vpop.f32.mrf.mxu0
    %v268 = vadd.f32 0.0, %v267
    %269 = vmatmul.bf16.gmra.mxu0 %v173
    %v270 = vpop.f32.mrf.mxu0
    %v271 = vadd.f32 0.0, %v270
    %v272 = vpop.f32.mrf.mxu0
    %v273 = vadd.f32 0.0, %v272
    %274 = vmatmul.bf16.gmra.mxu0 %v174
    %v275 = vpop.f32.mrf.mxu0
    %v276 = vadd.f32 0.0, %v275
    %v277 = vpop.f32.mrf.mxu0
    %v278 = vadd.f32 0.0, %v277
    %279 = vmatmul.bf16.gmra.mxu0 %v175
    %v280 = vpop.f32.mrf.mxu0
    %v281 = vadd.f32 0.0, %v280
    %v282 = vpop.f32.mrf.mxu0
    %v283 = vadd.f32 0.0, %v282
    %284 = vmatmul.bf16.gmra.mxu0 %v176
    %v285 = vpop.f32.mrf.mxu0
    %v286 = vadd.f32 0.0, %v285
    %v287 = vpop.f32.mrf.mxu0
    %v288 = vadd.f32 0.0, %v287
    %289 = vdwg.mxu0
    %v290 = vpack.c.bf16 %v253, %v251
    %v291 = vpack.c.bf16 %v258, %v256
    %v292 = vpack.c.bf16 %v263, %v261
    %v293 = vpack.c.bf16 %v268, %v266
    %v294 = vpack.c.bf16 %v273, %v271
    %v295 = vpack.c.bf16 %v278, %v276
    %v296 = vpack.c.bf16 %v283, %v281
    %v297 = vpack.c.bf16 %v288, %v286
    %v298 = vld [vmem:[%s6] sm:$0x1]
    %v300 = vperm.slane %v298, 0
    %v318 = vunpack.c.l.b16 %v153
    %v319 = vunpack.c.l.b16 %v154
    %v320 = vunpack.c.l.b16 %v155
    %v321 = vunpack.c.l.b16 %v156
    %v322 = vunpack.c.l.b16 %v157
    %v323 = vunpack.c.l.b16 %v158
    %v324 = vunpack.c.l.b16 %v159
    %v325 = vunpack.c.l.b16 %v160
    %v326 = vunpack.c.l.b16 %v161
    %v327 = vunpack.c.l.b16 %v162
    %v328 = vunpack.c.l.b16 %v163
    %v329 = vunpack.c.l.b16 %v164
    %v330 = vunpack.c.l.b16 %v165
    %v331 = vunpack.c.l.b16 %v166
    %v332 = vunpack.c.l.b16 %v167
    %v333 = vunpack.c.l.b16 %v168
    %v334 = vpack.c.b16 %v319, %v318
    %v335 = vpack.c.b16 %v321, %v320
    %v336 = vpack.c.b16 %v323, %v322
    %v337 = vpack.c.b16 %v325, %v324
    %v338 = vpack.c.b16 %v327, %v326
    %v339 = vpack.c.b16 %v329, %v328
    %v340 = vpack.c.b16 %v331, %v330
    %v341 = vpack.c.b16 %v333, %v332
    %350 = vmatpush.bf16.msra.mxu0 %v297
    %351 = vmatpush.bf16.msra.mxu0 %v296
    %352 = vmatpush.bf16.msra.mxu0 %v295
    %353 = vmatpush.bf16.msra.mxu0 %v294
    %354 = vmatpush.bf16.msra.mxu0 %v293
    %355 = vmatpush.bf16.msra.mxu0 %v292
    %356 = vmatpush.bf16.msra.mxu0 %v291
    %357 = vmatpush.bf16.msra.mxu0 %v290
    %358 = vmatmul.bf16.gmra.mxu0 %v334
    %v359 = vpop.f32.mrf.mxu0
    %v360 = vadd.f32 %v300, %v359
    %v361 = vpop.f32.mrf.mxu0
    %v362 = vadd.f32 %v300, %v361
    %363 = vmatmul.bf16.gmra.mxu0 %v335
    %v364 = vpop.f32.mrf.mxu0
    %v365 = vadd.f32 %v300, %v364
    %v366 = vpop.f32.mrf.mxu0
    %v367 = vadd.f32 %v300, %v366
    %368 = vmatmul.bf16.gmra.mxu0 %v336
    %v369 = vpop.f32.mrf.mxu0
    %v370 = vadd.f32 %v300, %v369
    %v371 = vpop.f32.mrf.mxu0
    %v372 = vadd.f32 %v300, %v371
    %373 = vmatmul.bf16.gmra.mxu0 %v337
    %v374 = vpop.f32.mrf.mxu0
    %v375 = vadd.f32 %v300, %v374
    %v376 = vpop.f32.mrf.mxu0
    %v377 = vadd.f32 %v300, %v376
    %378 = vmatmul.bf16.gmra.mxu0 %v338
    %v379 = vpop.f32.mrf.mxu0
    %v380 = vadd.f32 %v300, %v379
    %v381 = vpop.f32.mrf.mxu0
    %v382 = vadd.f32 %v300, %v381
    %383 = vmatmul.bf16.gmra.mxu0 %v339
    %v384 = vpop.f32.mrf.mxu0
    %v385 = vadd.f32 %v300, %v384
    %v386 = vpop.f32.mrf.mxu0
    %v387 = vadd.f32 %v300, %v386
    %388 = vmatmul.bf16.gmra.mxu0 %v340
    %v389 = vpop.f32.mrf.mxu0
    %v390 = vadd.f32 %v300, %v389
    %v391 = vpop.f32.mrf.mxu0
    %v392 = vadd.f32 %v300, %v391
    %393 = vmatmul.bf16.gmra.mxu0 %v341
    %v394 = vpop.f32.mrf.mxu0
    %v395 = vadd.f32 %v300, %v394
    %v396 = vpop.f32.mrf.mxu0
    %v397 = vadd.f32 %v300, %v396
    %398 = vdwg.mxu0
    %v399 = vmax.f32 %v360, 0.0
    %v400 = vmax.f32 %v362, 0.0
    %v401 = vmax.f32 %v365, 0.0
    %v402 = vmax.f32 %v367, 0.0
    %v403 = vmax.f32 %v370, 0.0
    %v404 = vmax.f32 %v372, 0.0
    %v405 = vmax.f32 %v375, 0.0
    %v406 = vmax.f32 %v377, 0.0
    %v407 = vmax.f32 %v380, 0.0
    %v408 = vmax.f32 %v382, 0.0
    %v409 = vmax.f32 %v385, 0.0
    %v410 = vmax.f32 %v387, 0.0
    %v411 = vmax.f32 %v390, 0.0
    %v412 = vmax.f32 %v392, 0.0
    %v413 = vmax.f32 %v395, 0.0
    %v414 = vmax.f32 %v397, 0.0
    %s415 = sld [smem:[#allocation2]]
    %v416 = vstv %s415
    %v417 = vmul.f32 %v399, %v416
    %v418 = vmul.f32 %v400, %v416
    %v419 = vmul.f32 %v401, %v416
    %v420 = vmul.f32 %v402, %v416
    %v421 = vmul.f32 %v403, %v416
    %v422 = vmul.f32 %v404, %v416
    %v423 = vmul.f32 %v405, %v416
    %v424 = vmul.f32 %v406, %v416
    %v425 = vmul.f32 %v407, %v416
    %v426 = vmul.f32 %v408, %v416
    %v427 = vmul.f32 %v409, %v416
    %v428 = vmul.f32 %v410, %v416
    %v429 = vmul.f32 %v411, %v416
    %v430 = vmul.f32 %v412, %v416
    %v431 = vmul.f32 %v413, %v416
    %v432 = vmul.f32 %v414, %v416
    %v433 = vadd.f32 %v417, 0.0
    %v434 = vadd.f32 %v418, 0.0
    %v435 = vadd.f32 %v419, 0.0
    %v436 = vadd.f32 %v420, 0.0
    %v437 = vadd.f32 %v421, 0.0
    %v438 = vadd.f32 %v422, 0.0
    %v439 = vadd.f32 %v423, 0.0
    %v440 = vadd.f32 %v424, 0.0
    %v441 = vadd.f32 %v425, 0.0
    %v442 = vadd.f32 %v426, 0.0
    %v443 = vadd.f32 %v427, 0.0
    %v444 = vadd.f32 %v428, 0.0
    %v445 = vadd.f32 %v429, 0.0
    %v446 = vadd.f32 %v430, 0.0
    %v447 = vadd.f32 %v431, 0.0
    %v448 = vadd.f32 %v432, 0.0
    %v449 = vpack.c.bf16 %v400, %v399
    %v450 = vpack.c.bf16 %v402, %v401
    %v451 = vpack.c.bf16 %v404, %v403
    %v452 = vpack.c.bf16 %v406, %v405
    %v453 = vpack.c.bf16 %v408, %v407
    %v454 = vpack.c.bf16 %v410, %v409
    %v455 = vpack.c.bf16 %v412, %v411
    %v456 = vpack.c.bf16 %v414, %v413
    %s457 = scalar_lea.vmem %s5, 64
    %v458 = vld [vmem:[%s457] sm:$0xf]
    %v459 = vld [vmem:[%s457 + $0x4] sm:$0xf]
    %v460 = vld [vmem:[%s457 + $0x8] sm:$0xf]
    %v461 = vld [vmem:[%s457 + $0xc] sm:$0xf]
    %v462 = vld [vmem:[%s457 + $0x10] sm:$0xf]
    %v463 = vld [vmem:[%s457 + $0x14] sm:$0xf]
    %v464 = vld [vmem:[%s457 + $0x18] sm:$0xf]
    %v465 = vld [vmem:[%s457 + $0x1c] sm:$0xf]
    %v466 = vld [vmem:[%s457 + $0x20] sm:$0xf]
    %v467 = vld [vmem:[%s457 + $0x24] sm:$0xf]
    %v468 = vld [vmem:[%s457 + $0x28] sm:$0xf]
    %v469 = vld [vmem:[%s457 + $0x2c] sm:$0xf]
    %v470 = vld [vmem:[%s457 + $0x30] sm:$0xf]
    %v471 = vld [vmem:[%s457 + $0x34] sm:$0xf]
    %v472 = vld [vmem:[%s457 + $0x38] sm:$0xf]
    %v473 = vld [vmem:[%s457 + $0x3c] sm:$0xf]
    %v490 = vunpack.c.l.b16 %v458
    %v491 = vunpack.c.l.b16 %v459
    %v492 = vunpack.c.l.b16 %v460
    %v493 = vunpack.c.l.b16 %v461
    %v494 = vunpack.c.l.b16 %v462
    %v495 = vunpack.c.l.b16 %v463
    %v496 = vunpack.c.l.b16 %v464
    %v497 = vunpack.c.l.b16 %v465
    %v498 = vunpack.c.l.b16 %v466
    %v499 = vunpack.c.l.b16 %v467
    %v500 = vunpack.c.l.b16 %v468
    %v501 = vunpack.c.l.b16 %v469
    %v502 = vunpack.c.l.b16 %v470
    %v503 = vunpack.c.l.b16 %v471
    %v504 = vunpack.c.l.b16 %v472
    %v505 = vunpack.c.l.b16 %v473
    %v506 = vpack.c.b16 %v491, %v490
    %v507 = vpack.c.b16 %v493, %v492
    %v508 = vpack.c.b16 %v495, %v494
    %v509 = vpack.c.b16 %v497, %v496
    %v510 = vpack.c.b16 %v499, %v498
    %v511 = vpack.c.b16 %v501, %v500
    %v512 = vpack.c.b16 %v503, %v502
    %v513 = vpack.c.b16 %v505, %v504
    %522 = vmatpush.bf16.msra.mxu0 %v513
    %523 = vmatpush.bf16.msra.mxu0 %v512
    %524 = vmatpush.bf16.msra.mxu0 %v511
    %525 = vmatpush.bf16.msra.mxu0 %v510
    %526 = vmatpush.bf16.msra.mxu0 %v509
    %527 = vmatpush.bf16.msra.mxu0 %v508
    %528 = vmatpush.bf16.msra.mxu0 %v507
    %529 = vmatpush.bf16.msra.mxu0 %v506
    %530 = vmatmul.bf16.gmra.mxu0 %v449
    %v531 = vpop.f32.mrf.mxu0
    %v532 = vadd.f32 0.0, %v531
    %v533 = vpop.f32.mrf.mxu0
    %v534 = vadd.f32 0.0, %v533
    %535 = vmatmul.bf16.gmra.mxu0 %v450
    %v536 = vpop.f32.mrf.mxu0
    %v537 = vadd.f32 0.0, %v536
    %v538 = vpop.f32.mrf.mxu0
    %v539 = vadd.f32 0.0, %v538
    %540 = vmatmul.bf16.gmra.mxu0 %v451
    %v541 = vpop.f32.mrf.mxu0
    %v542 = vadd.f32 0.0, %v541
    %v543 = vpop.f32.mrf.mxu0
    %v544 = vadd.f32 0.0, %v543
    %545 = vmatmul.bf16.gmra.mxu0 %v452
    %v546 = vpop.f32.mrf.mxu0
    %v547 = vadd.f32 0.0, %v546
    %v548 = vpop.f32.mrf.mxu0
    %v549 = vadd.f32 0.0, %v548
    %550 = vmatmul.bf16.gmra.mxu0 %v453
    %v551 = vpop.f32.mrf.mxu0
    %v552 = vadd.f32 0.0, %v551
    %v553 = vpop.f32.mrf.mxu0
    %v554 = vadd.f32 0.0, %v553
    %555 = vmatmul.bf16.gmra.mxu0 %v454
    %v556 = vpop.f32.mrf.mxu0
    %v557 = vadd.f32 0.0, %v556
    %v558 = vpop.f32.mrf.mxu0
    %v559 = vadd.f32 0.0, %v558
    %560 = vmatmul.bf16.gmra.mxu0 %v455
    %v561 = vpop.f32.mrf.mxu0
    %v562 = vadd.f32 0.0, %v561
    %v563 = vpop.f32.mrf.mxu0
    %v564 = vadd.f32 0.0, %v563
    %565 = vmatmul.bf16.gmra.mxu0 %v456
    %v566 = vpop.f32.mrf.mxu0
    %v567 = vadd.f32 0.0, %v566
    %v568 = vpop.f32.mrf.mxu0
    %v569 = vadd.f32 0.0, %v568
    %570 = vdwg.mxu0
    %v571 = vpack.c.bf16 %v534, %v532
    %v572 = vpack.c.bf16 %v539, %v537
    %v573 = vpack.c.bf16 %v544, %v542
    %v574 = vpack.c.bf16 %v549, %v547
    %v575 = vpack.c.bf16 %v554, %v552
    %v576 = vpack.c.bf16 %v559, %v557
    %v577 = vpack.c.bf16 %v564, %v562
    %v578 = vpack.c.bf16 %v569, %v567
    %s579 = scalar_lea.vmem %s6, 1
    %v580 = vld [vmem:[%s579] sm:$0x1]
    %v582 = vperm.slane %v580, 0
    %584 = vmatpush.bf16.msra.mxu0 %v578
    %585 = vmatpush.bf16.msra.mxu0 %v577
    %586 = vmatpush.bf16.msra.mxu0 %v576
    %587 = vmatpush.bf16.msra.mxu0 %v575
    %588 = vmatpush.bf16.msra.mxu0 %v574
    %589 = vmatpush.bf16.msra.mxu0 %v573
    %590 = vmatpush.bf16.msra.mxu0 %v572
    %591 = vmatpush.bf16.msra.mxu0 %v571
    %592 = vmatmul.bf16.gmra.mxu0 %v334
    %v593 = vpop.f32.mrf.mxu0
    %v594 = vadd.f32 %v582, %v593
    %v595 = vpop.f32.mrf.mxu0
    %v596 = vadd.f32 %v582, %v595
    %597 = vmatmul.bf16.gmra.mxu0 %v335
    %v598 = vpop.f32.mrf.mxu0
    %v599 = vadd.f32 %v582, %v598
    %v600 = vpop.f32.mrf.mxu0
    %v601 = vadd.f32 %v582, %v600
    %602 = vmatmul.bf16.gmra.mxu0 %v336
    %v603 = vpop.f32.mrf.mxu0
    %v604 = vadd.f32 %v582, %v603
    %v605 = vpop.f32.mrf.mxu0
    %v606 = vadd.f32 %v582, %v605
    %607 = vmatmul.bf16.gmra.mxu0 %v337
    %v608 = vpop.f32.mrf.mxu0
    %v609 = vadd.f32 %v582, %v608
    %v610 = vpop.f32.mrf.mxu0
    %v611 = vadd.f32 %v582, %v610
    %612 = vmatmul.bf16.gmra.mxu0 %v338
    %v613 = vpop.f32.mrf.mxu0
    %v614 = vadd.f32 %v582, %v613
    %v615 = vpop.f32.mrf.mxu0
    %v616 = vadd.f32 %v582, %v615
    %617 = vmatmul.bf16.gmra.mxu0 %v339
    %v618 = vpop.f32.mrf.mxu0
    %v619 = vadd.f32 %v582, %v618
    %v620 = vpop.f32.mrf.mxu0
    %v621 = vadd.f32 %v582, %v620
    %622 = vmatmul.bf16.gmra.mxu0 %v340
    %v623 = vpop.f32.mrf.mxu0
    %v624 = vadd.f32 %v582, %v623
    %v625 = vpop.f32.mrf.mxu0
    %v626 = vadd.f32 %v582, %v625
    %627 = vmatmul.bf16.gmra.mxu0 %v341
    %v628 = vpop.f32.mrf.mxu0
    %v629 = vadd.f32 %v582, %v628
    %v630 = vpop.f32.mrf.mxu0
    %v631 = vadd.f32 %v582, %v630
    %632 = vdwg.mxu0
    %v633 = vmax.f32 %v594, 0.0
    %v634 = vmax.f32 %v596, 0.0
    %v635 = vmax.f32 %v599, 0.0
    %v636 = vmax.f32 %v601, 0.0
    %v637 = vmax.f32 %v604, 0.0
    %v638 = vmax.f32 %v606, 0.0
    %v639 = vmax.f32 %v609, 0.0
    %v640 = vmax.f32 %v611, 0.0
    %v641 = vmax.f32 %v614, 0.0
    %v642 = vmax.f32 %v616, 0.0
    %v643 = vmax.f32 %v619, 0.0
    %v644 = vmax.f32 %v621, 0.0
    %v645 = vmax.f32 %v624, 0.0
    %v646 = vmax.f32 %v626, 0.0
    %v647 = vmax.f32 %v629, 0.0
    %v648 = vmax.f32 %v631, 0.0
    %s649 = sld [smem:[#allocation2 + $0x1]]
    %v650 = vstv %s649
    %v651 = vmul.f32 %v633, %v650
    %v652 = vmul.f32 %v634, %v650
    %v653 = vmul.f32 %v635, %v650
    %v654 = vmul.f32 %v636, %v650
    %v655 = vmul.f32 %v637, %v650
    %v656 = vmul.f32 %v638, %v650
    %v657 = vmul.f32 %v639, %v650
    %v658 = vmul.f32 %v640, %v650
    %v659 = vmul.f32 %v641, %v650
    %v660 = vmul.f32 %v642, %v650
    %v661 = vmul.f32 %v643, %v650
    %v662 = vmul.f32 %v644, %v650
    %v663 = vmul.f32 %v645, %v650
    %v664 = vmul.f32 %v646, %v650
    %v665 = vmul.f32 %v647, %v650
    %v666 = vmul.f32 %v648, %v650
    %v667 = vadd.f32 %v433, %v651
    %v668 = vadd.f32 %v434, %v652
    %v669 = vadd.f32 %v435, %v653
    %v670 = vadd.f32 %v436, %v654
    %v671 = vadd.f32 %v437, %v655
    %v672 = vadd.f32 %v438, %v656
    %v673 = vadd.f32 %v439, %v657
    %v674 = vadd.f32 %v440, %v658
    %v675 = vadd.f32 %v441, %v659
    %v676 = vadd.f32 %v442, %v660
    %v677 = vadd.f32 %v443, %v661
    %v678 = vadd.f32 %v444, %v662
    %v679 = vadd.f32 %v445, %v663
    %v680 = vadd.f32 %v446, %v664
    %v681 = vadd.f32 %v447, %v665
    %v682 = vadd.f32 %v448, %v666
    %v683 = vpack.c.bf16 %v634, %v633
    %v684 = vpack.c.bf16 %v636, %v635
    %v685 = vpack.c.bf16 %v638, %v637
    %v686 = vpack.c.bf16 %v640, %v639
    %v687 = vpack.c.bf16 %v642, %v641
    %v688 = vpack.c.bf16 %v644, %v643
    %v689 = vpack.c.bf16 %v646, %v645
    %v690 = vpack.c.bf16 %v648, %v647
    %s691 = scalar_lea.vmem %s5, 128
    %v692 = vld [vmem:[%s691] sm:$0xf]
    %v693 = vld [vmem:[%s691 + $0x4] sm:$0xf]
    %v694 = vld [vmem:[%s691 + $0x8] sm:$0xf]
    %v695 = vld [vmem:[%s691 + $0xc] sm:$0xf]
    %v696 = vld [vmem:[%s691 + $0x10] sm:$0xf]
    %v697 = vld [vmem:[%s691 + $0x14] sm:$0xf]
    %v698 = vld [vmem:[%s691 + $0x18] sm:$0xf]
    %v699 = vld [vmem:[%s691 + $0x1c] sm:$0xf]
    %v700 = vld [vmem:[%s691 + $0x20] sm:$0xf]
    %v701 = vld [vmem:[%s691 + $0x24] sm:$0xf]
    %v702 = vld [vmem:[%s691 + $0x28] sm:$0xf]
    %v703 = vld [vmem:[%s691 + $0x2c] sm:$0xf]
    %v704 = vld [vmem:[%s691 + $0x30] sm:$0xf]
    %v705 = vld [vmem:[%s691 + $0x34] sm:$0xf]
    %v706 = vld [vmem:[%s691 + $0x38] sm:$0xf]
    %v707 = vld [vmem:[%s691 + $0x3c] sm:$0xf]
    %v724 = vunpack.c.l.b16 %v692
    %v725 = vunpack.c.l.b16 %v693
    %v726 = vunpack.c.l.b16 %v694
    %v727 = vunpack.c.l.b16 %v695
    %v728 = vunpack.c.l.b16 %v696
    %v729 = vunpack.c.l.b16 %v697
    %v730 = vunpack.c.l.b16 %v698
    %v731 = vunpack.c.l.b16 %v699
    %v732 = vunpack.c.l.b16 %v700
    %v733 = vunpack.c.l.b16 %v701
    %v734 = vunpack.c.l.b16 %v702
    %v735 = vunpack.c.l.b16 %v703
    %v736 = vunpack.c.l.b16 %v704
    %v737 = vunpack.c.l.b16 %v705
    %v738 = vunpack.c.l.b16 %v706
    %v739 = vunpack.c.l.b16 %v707
    %v740 = vpack.c.b16 %v725, %v724
    %v741 = vpack.c.b16 %v727, %v726
    %v742 = vpack.c.b16 %v729, %v728
    %v743 = vpack.c.b16 %v731, %v730
    %v744 = vpack.c.b16 %v733, %v732
    %v745 = vpack.c.b16 %v735, %v734
    %v746 = vpack.c.b16 %v737, %v736
    %v747 = vpack.c.b16 %v739, %v738
    %756 = vmatpush.bf16.msra.mxu0 %v747
    %757 = vmatpush.bf16.msra.mxu0 %v746
    %758 = vmatpush.bf16.msra.mxu0 %v745
    %759 = vmatpush.bf16.msra.mxu0 %v744
    %760 = vmatpush.bf16.msra.mxu0 %v743
    %761 = vmatpush.bf16.msra.mxu0 %v742
    %762 = vmatpush.bf16.msra.mxu0 %v741
    %763 = vmatpush.bf16.msra.mxu0 %v740
    %764 = vmatmul.bf16.gmra.mxu0 %v683
    %v765 = vpop.f32.mrf.mxu0
    %v766 = vadd.f32 0.0, %v765
    %v767 = vpop.f32.mrf.mxu0
    %v768 = vadd.f32 0.0, %v767
    %769 = vmatmul.bf16.gmra.mxu0 %v684
    %v770 = vpop.f32.mrf.mxu0
    %v771 = vadd.f32 0.0, %v770
    %v772 = vpop.f32.mrf.mxu0
    %v773 = vadd.f32 0.0, %v772
    %774 = vmatmul.bf16.gmra.mxu0 %v685
    %v775 = vpop.f32.mrf.mxu0
    %v776 = vadd.f32 0.0, %v775
    %v777 = vpop.f32.mrf.mxu0
    %v778 = vadd.f32 0.0, %v777
    %779 = vmatmul.bf16.gmra.mxu0 %v686
    %v780 = vpop.f32.mrf.mxu0
    %v781 = vadd.f32 0.0, %v780
    %v782 = vpop.f32.mrf.mxu0
    %v783 = vadd.f32 0.0, %v782
    %784 = vmatmul.bf16.gmra.mxu0 %v687
    %v785 = vpop.f32.mrf.mxu0
    %v786 = vadd.f32 0.0, %v785
    %v787 = vpop.f32.mrf.mxu0
    %v788 = vadd.f32 0.0, %v787
    %789 = vmatmul.bf16.gmra.mxu0 %v688
    %v790 = vpop.f32.mrf.mxu0
    %v791 = vadd.f32 0.0, %v790
    %v792 = vpop.f32.mrf.mxu0
    %v793 = vadd.f32 0.0, %v792
    %794 = vmatmul.bf16.gmra.mxu0 %v689
    %v795 = vpop.f32.mrf.mxu0
    %v796 = vadd.f32 0.0, %v795
    %v797 = vpop.f32.mrf.mxu0
    %v798 = vadd.f32 0.0, %v797
    %799 = vmatmul.bf16.gmra.mxu0 %v690
    %v800 = vpop.f32.mrf.mxu0
    %v801 = vadd.f32 0.0, %v800
    %v802 = vpop.f32.mrf.mxu0
    %v803 = vadd.f32 0.0, %v802
    %804 = vdwg.mxu0
    %v805 = vpack.c.bf16 %v768, %v766
    %v806 = vpack.c.bf16 %v773, %v771
    %v807 = vpack.c.bf16 %v778, %v776
    %v808 = vpack.c.bf16 %v783, %v781
    %v809 = vpack.c.bf16 %v788, %v786
    %v810 = vpack.c.bf16 %v793, %v791
    %v811 = vpack.c.bf16 %v798, %v796
    %v812 = vpack.c.bf16 %v803, %v801
    %s813 = scalar_lea.vmem %s6, 2
    %v814 = vld [vmem:[%s813] sm:$0x1]
    %v816 = vperm.slane %v814, 0
    %818 = vmatpush.bf16.msra.mxu0 %v812
    %819 = vmatpush.bf16.msra.mxu0 %v811
    %820 = vmatpush.bf16.msra.mxu0 %v810
    %821 = vmatpush.bf16.msra.mxu0 %v809
    %822 = vmatpush.bf16.msra.mxu0 %v808
    %823 = vmatpush.bf16.msra.mxu0 %v807
    %824 = vmatpush.bf16.msra.mxu0 %v806
    %825 = vmatpush.bf16.msra.mxu0 %v805
    %826 = vmatmul.bf16.gmra.mxu0 %v334
    %v827 = vpop.f32.mrf.mxu0
    %v828 = vadd.f32 %v816, %v827
    %v829 = vpop.f32.mrf.mxu0
    %v830 = vadd.f32 %v816, %v829
    %831 = vmatmul.bf16.gmra.mxu0 %v335
    %v832 = vpop.f32.mrf.mxu0
    %v833 = vadd.f32 %v816, %v832
    %v834 = vpop.f32.mrf.mxu0
    %v835 = vadd.f32 %v816, %v834
    %836 = vmatmul.bf16.gmra.mxu0 %v336
    %v837 = vpop.f32.mrf.mxu0
    %v838 = vadd.f32 %v816, %v837
    %v839 = vpop.f32.mrf.mxu0
    %v840 = vadd.f32 %v816, %v839
    %841 = vmatmul.bf16.gmra.mxu0 %v337
    %v842 = vpop.f32.mrf.mxu0
    %v843 = vadd.f32 %v816, %v842
    %v844 = vpop.f32.mrf.mxu0
    %v845 = vadd.f32 %v816, %v844
    %846 = vmatmul.bf16.gmra.mxu0 %v338
    %v847 = vpop.f32.mrf.mxu0
    %v848 = vadd.f32 %v816, %v847
    %v849 = vpop.f32.mrf.mxu0
    %v850 = vadd.f32 %v816, %v849
    %851 = vmatmul.bf16.gmra.mxu0 %v339
    %v852 = vpop.f32.mrf.mxu0
    %v853 = vadd.f32 %v816, %v852
    %v854 = vpop.f32.mrf.mxu0
    %v855 = vadd.f32 %v816, %v854
    %856 = vmatmul.bf16.gmra.mxu0 %v340
    %v857 = vpop.f32.mrf.mxu0
    %v858 = vadd.f32 %v816, %v857
    %v859 = vpop.f32.mrf.mxu0
    %v860 = vadd.f32 %v816, %v859
    %861 = vmatmul.bf16.gmra.mxu0 %v341
    %v862 = vpop.f32.mrf.mxu0
    %v863 = vadd.f32 %v816, %v862
    %v864 = vpop.f32.mrf.mxu0
    %v865 = vadd.f32 %v816, %v864
    %866 = vdwg.mxu0
    %v867 = vmax.f32 %v828, 0.0
    %v868 = vmax.f32 %v830, 0.0
    %v869 = vmax.f32 %v833, 0.0
    %v870 = vmax.f32 %v835, 0.0
    %v871 = vmax.f32 %v838, 0.0
    %v872 = vmax.f32 %v840, 0.0
    %v873 = vmax.f32 %v843, 0.0
    %v874 = vmax.f32 %v845, 0.0
    %v875 = vmax.f32 %v848, 0.0
    %v876 = vmax.f32 %v850, 0.0
    %v877 = vmax.f32 %v853, 0.0
    %v878 = vmax.f32 %v855, 0.0
    %v879 = vmax.f32 %v858, 0.0
    %v880 = vmax.f32 %v860, 0.0
    %v881 = vmax.f32 %v863, 0.0
    %v882 = vmax.f32 %v865, 0.0
    %s883 = sld [smem:[#allocation2 + $0x2]]
    %v884 = vstv %s883
    %v885 = vmul.f32 %v867, %v884
    %v886 = vmul.f32 %v868, %v884
    %v887 = vmul.f32 %v869, %v884
    %v888 = vmul.f32 %v870, %v884
    %v889 = vmul.f32 %v871, %v884
    %v890 = vmul.f32 %v872, %v884
    %v891 = vmul.f32 %v873, %v884
    %v892 = vmul.f32 %v874, %v884
    %v893 = vmul.f32 %v875, %v884
    %v894 = vmul.f32 %v876, %v884
    %v895 = vmul.f32 %v877, %v884
    %v896 = vmul.f32 %v878, %v884
    %v897 = vmul.f32 %v879, %v884
    %v898 = vmul.f32 %v880, %v884
    %v899 = vmul.f32 %v881, %v884
    %v900 = vmul.f32 %v882, %v884
    %v901 = vadd.f32 %v667, %v885
    %v902 = vadd.f32 %v668, %v886
    %v903 = vadd.f32 %v669, %v887
    %v904 = vadd.f32 %v670, %v888
    %v905 = vadd.f32 %v671, %v889
    %v906 = vadd.f32 %v672, %v890
    %v907 = vadd.f32 %v673, %v891
    %v908 = vadd.f32 %v674, %v892
    %v909 = vadd.f32 %v675, %v893
    %v910 = vadd.f32 %v676, %v894
    %v911 = vadd.f32 %v677, %v895
    %v912 = vadd.f32 %v678, %v896
    %v913 = vadd.f32 %v679, %v897
    %v914 = vadd.f32 %v680, %v898
    %v915 = vadd.f32 %v681, %v899
    %v916 = vadd.f32 %v682, %v900
    %v917 = vpack.c.bf16 %v868, %v867
    %v918 = vpack.c.bf16 %v870, %v869
    %v919 = vpack.c.bf16 %v872, %v871
    %v920 = vpack.c.bf16 %v874, %v873
    %v921 = vpack.c.bf16 %v876, %v875
    %v922 = vpack.c.bf16 %v878, %v877
    %v923 = vpack.c.bf16 %v880, %v879
    %v924 = vpack.c.bf16 %v882, %v881
    %s925 = scalar_lea.vmem %s5, 192
    %v926 = vld [vmem:[%s925] sm:$0xf]
    %v927 = vld [vmem:[%s925 + $0x4] sm:$0xf]
    %v928 = vld [vmem:[%s925 + $0x8] sm:$0xf]
    %v929 = vld [vmem:[%s925 + $0xc] sm:$0xf]
    %v930 = vld [vmem:[%s925 + $0x10] sm:$0xf]
    %v931 = vld [vmem:[%s925 + $0x14] sm:$0xf]
    %v932 = vld [vmem:[%s925 + $0x18] sm:$0xf]
    %v933 = vld [vmem:[%s925 + $0x1c] sm:$0xf]
    %v934 = vld [vmem:[%s925 + $0x20] sm:$0xf]
    %v935 = vld [vmem:[%s925 + $0x24] sm:$0xf]
    %v936 = vld [vmem:[%s925 + $0x28] sm:$0xf]
    %v937 = vld [vmem:[%s925 + $0x2c] sm:$0xf]
    %v938 = vld [vmem:[%s925 + $0x30] sm:$0xf]
    %v939 = vld [vmem:[%s925 + $0x34] sm:$0xf]
    %v940 = vld [vmem:[%s925 + $0x38] sm:$0xf]
    %v941 = vld [vmem:[%s925 + $0x3c] sm:$0xf]
    %v958 = vunpack.c.l.b16 %v926
    %v959 = vunpack.c.l.b16 %v927
    %v960 = vunpack.c.l.b16 %v928
    %v961 = vunpack.c.l.b16 %v929
    %v962 = vunpack.c.l.b16 %v930
    %v963 = vunpack.c.l.b16 %v931
    %v964 = vunpack.c.l.b16 %v932
    %v965 = vunpack.c.l.b16 %v933
    %v966 = vunpack.c.l.b16 %v934
    %v967 = vunpack.c.l.b16 %v935
    %v968 = vunpack.c.l.b16 %v936
    %v969 = vunpack.c.l.b16 %v937
    %v970 = vunpack.c.l.b16 %v938
    %v971 = vunpack.c.l.b16 %v939
    %v972 = vunpack.c.l.b16 %v940
    %v973 = vunpack.c.l.b16 %v941
    %v974 = vpack.c.b16 %v959, %v958
    %v975 = vpack.c.b16 %v961, %v960
    %v976 = vpack.c.b16 %v963, %v962
    %v977 = vpack.c.b16 %v965, %v964
    %v978 = vpack.c.b16 %v967, %v966
    %v979 = vpack.c.b16 %v969, %v968
    %v980 = vpack.c.b16 %v971, %v970
    %v981 = vpack.c.b16 %v973, %v972
    %990 = vmatpush.bf16.msra.mxu0 %v981
    %991 = vmatpush.bf16.msra.mxu0 %v980
    %992 = vmatpush.bf16.msra.mxu0 %v979
    %993 = vmatpush.bf16.msra.mxu0 %v978
    %994 = vmatpush.bf16.msra.mxu0 %v977
    %995 = vmatpush.bf16.msra.mxu0 %v976
    %996 = vmatpush.bf16.msra.mxu0 %v975
    %997 = vmatpush.bf16.msra.mxu0 %v974
    %998 = vmatmul.bf16.gmra.mxu0 %v917
    %v999 = vpop.f32.mrf.mxu0
    %v1000 = vadd.f32 0.0, %v999
    %v1001 = vpop.f32.mrf.mxu0
    %v1002 = vadd.f32 0.0, %v1001
    %1003 = vmatmul.bf16.gmra.mxu0 %v918
    %v1004 = vpop.f32.mrf.mxu0
    %v1005 = vadd.f32 0.0, %v1004
    %v1006 = vpop.f32.mrf.mxu0
    %v1007 = vadd.f32 0.0, %v1006
    %1008 = vmatmul.bf16.gmra.mxu0 %v919
    %v1009 = vpop.f32.mrf.mxu0
    %v1010 = vadd.f32 0.0, %v1009
    %v1011 = vpop.f32.mrf.mxu0
    %v1012 = vadd.f32 0.0, %v1011
    %1013 = vmatmul.bf16.gmra.mxu0 %v920
    %v1014 = vpop.f32.mrf.mxu0
    %v1015 = vadd.f32 0.0, %v1014
    %v1016 = vpop.f32.mrf.mxu0
    %v1017 = vadd.f32 0.0, %v1016
    %1018 = vmatmul.bf16.gmra.mxu0 %v921
    %v1019 = vpop.f32.mrf.mxu0
    %v1020 = vadd.f32 0.0, %v1019
    %v1021 = vpop.f32.mrf.mxu0
    %v1022 = vadd.f32 0.0, %v1021
    %1023 = vmatmul.bf16.gmra.mxu0 %v922
    %v1024 = vpop.f32.mrf.mxu0
    %v1025 = vadd.f32 0.0, %v1024
    %v1026 = vpop.f32.mrf.mxu0
    %v1027 = vadd.f32 0.0, %v1026
    %1028 = vmatmul.bf16.gmra.mxu0 %v923
    %v1029 = vpop.f32.mrf.mxu0
    %v1030 = vadd.f32 0.0, %v1029
    %v1031 = vpop.f32.mrf.mxu0
    %v1032 = vadd.f32 0.0, %v1031
    %1033 = vmatmul.bf16.gmra.mxu0 %v924
    %v1034 = vpop.f32.mrf.mxu0
    %v1035 = vadd.f32 0.0, %v1034
    %v1036 = vpop.f32.mrf.mxu0
    %v1037 = vadd.f32 0.0, %v1036
    %1038 = vdwg.mxu0
    %v1039 = vpack.c.bf16 %v1002, %v1000
    %v1040 = vpack.c.bf16 %v1007, %v1005
    %v1041 = vpack.c.bf16 %v1012, %v1010
    %v1042 = vpack.c.bf16 %v1017, %v1015
    %v1043 = vpack.c.bf16 %v1022, %v1020
    %v1044 = vpack.c.bf16 %v1027, %v1025
    %v1045 = vpack.c.bf16 %v1032, %v1030
    %v1046 = vpack.c.bf16 %v1037, %v1035
    %s1047 = scalar_lea.vmem %s6, 3
    %v1048 = vld [vmem:[%s1047] sm:$0x1]
    %v1050 = vperm.slane %v1048, 0
    %1052 = vmatpush.bf16.msra.mxu0 %v1046
    %1053 = vmatpush.bf16.msra.mxu0 %v1045
    %1054 = vmatpush.bf16.msra.mxu0 %v1044
    %1055 = vmatpush.bf16.msra.mxu0 %v1043
    %1056 = vmatpush.bf16.msra.mxu0 %v1042
    %1057 = vmatpush.bf16.msra.mxu0 %v1041
    %1058 = vmatpush.bf16.msra.mxu0 %v1040
    %1059 = vmatpush.bf16.msra.mxu0 %v1039
    %1060 = vmatmul.bf16.gmra.mxu0 %v334
    %v1061 = vpop.f32.mrf.mxu0
    %v1062 = vadd.f32 %v1050, %v1061
    %v1063 = vpop.f32.mrf.mxu0
    %v1064 = vadd.f32 %v1050, %v1063
    %1065 = vmatmul.bf16.gmra.mxu0 %v335
    %v1066 = vpop.f32.mrf.mxu0
    %v1067 = vadd.f32 %v1050, %v1066
    %v1068 = vpop.f32.mrf.mxu0
    %v1069 = vadd.f32 %v1050, %v1068
    %1070 = vmatmul.bf16.gmra.mxu0 %v336
    %v1071 = vpop.f32.mrf.mxu0
    %v1072 = vadd.f32 %v1050, %v1071
    %v1073 = vpop.f32.mrf.mxu0
    %v1074 = vadd.f32 %v1050, %v1073
    %1075 = vmatmul.bf16.gmra.mxu0 %v337
    %v1076 = vpop.f32.mrf.mxu0
    %v1077 = vadd.f32 %v1050, %v1076
    %v1078 = vpop.f32.mrf.mxu0
    %v1079 = vadd.f32 %v1050, %v1078
    %1080 = vmatmul.bf16.gmra.mxu0 %v338
    %v1081 = vpop.f32.mrf.mxu0
    %v1082 = vadd.f32 %v1050, %v1081
    %v1083 = vpop.f32.mrf.mxu0
    %v1084 = vadd.f32 %v1050, %v1083
    %1085 = vmatmul.bf16.gmra.mxu0 %v339
    %v1086 = vpop.f32.mrf.mxu0
    %v1087 = vadd.f32 %v1050, %v1086
    %v1088 = vpop.f32.mrf.mxu0
    %v1089 = vadd.f32 %v1050, %v1088
    %1090 = vmatmul.bf16.gmra.mxu0 %v340
    %v1091 = vpop.f32.mrf.mxu0
    %v1092 = vadd.f32 %v1050, %v1091
    %v1093 = vpop.f32.mrf.mxu0
    %v1094 = vadd.f32 %v1050, %v1093
    %1095 = vmatmul.bf16.gmra.mxu0 %v341
    %v1096 = vpop.f32.mrf.mxu0
    %v1097 = vadd.f32 %v1050, %v1096
    %v1098 = vpop.f32.mrf.mxu0
    %v1099 = vadd.f32 %v1050, %v1098
    %1100 = vdwg.mxu0
    %v1101 = vmax.f32 %v1062, 0.0
    %v1102 = vmax.f32 %v1064, 0.0
    %v1103 = vmax.f32 %v1067, 0.0
    %v1104 = vmax.f32 %v1069, 0.0
    %v1105 = vmax.f32 %v1072, 0.0
    %v1106 = vmax.f32 %v1074, 0.0
    %v1107 = vmax.f32 %v1077, 0.0
    %v1108 = vmax.f32 %v1079, 0.0
    %v1109 = vmax.f32 %v1082, 0.0
    %v1110 = vmax.f32 %v1084, 0.0
    %v1111 = vmax.f32 %v1087, 0.0
    %v1112 = vmax.f32 %v1089, 0.0
    %v1113 = vmax.f32 %v1092, 0.0
    %v1114 = vmax.f32 %v1094, 0.0
    %v1115 = vmax.f32 %v1097, 0.0
    %v1116 = vmax.f32 %v1099, 0.0
    %s1117 = sld [smem:[#allocation2 + $0x3]]
    %v1118 = vstv %s1117
    %v1119 = vmul.f32 %v1101, %v1118
    %v1120 = vmul.f32 %v1102, %v1118
    %v1121 = vmul.f32 %v1103, %v1118
    %v1122 = vmul.f32 %v1104, %v1118
    %v1123 = vmul.f32 %v1105, %v1118
    %v1124 = vmul.f32 %v1106, %v1118
    %v1125 = vmul.f32 %v1107, %v1118
    %v1126 = vmul.f32 %v1108, %v1118
    %v1127 = vmul.f32 %v1109, %v1118
    %v1128 = vmul.f32 %v1110, %v1118
    %v1129 = vmul.f32 %v1111, %v1118
    %v1130 = vmul.f32 %v1112, %v1118
    %v1131 = vmul.f32 %v1113, %v1118
    %v1132 = vmul.f32 %v1114, %v1118
    %v1133 = vmul.f32 %v1115, %v1118
    %v1134 = vmul.f32 %v1116, %v1118
    %v1135 = vadd.f32 %v901, %v1119
    %v1136 = vadd.f32 %v902, %v1120
    %v1137 = vadd.f32 %v903, %v1121
    %v1138 = vadd.f32 %v904, %v1122
    %v1139 = vadd.f32 %v905, %v1123
    %v1140 = vadd.f32 %v906, %v1124
    %v1141 = vadd.f32 %v907, %v1125
    %v1142 = vadd.f32 %v908, %v1126
    %v1143 = vadd.f32 %v909, %v1127
    %v1144 = vadd.f32 %v910, %v1128
    %v1145 = vadd.f32 %v911, %v1129
    %v1146 = vadd.f32 %v912, %v1130
    %v1147 = vadd.f32 %v913, %v1131
    %v1148 = vadd.f32 %v914, %v1132
    %v1149 = vadd.f32 %v915, %v1133
    %v1150 = vadd.f32 %v916, %v1134
    %s1151 = scalar_lea.vmem %s4, 64
    %v1152 = vld [vmem:[%s1151] sm:$0xf]
    %v1153 = vld [vmem:[%s1151 + $0x4] sm:$0xf]
    %v1154 = vld [vmem:[%s1151 + $0x8] sm:$0xf]
    %v1155 = vld [vmem:[%s1151 + $0xc] sm:$0xf]
    %v1156 = vld [vmem:[%s1151 + $0x10] sm:$0xf]
    %v1157 = vld [vmem:[%s1151 + $0x14] sm:$0xf]
    %v1158 = vld [vmem:[%s1151 + $0x18] sm:$0xf]
    %v1159 = vld [vmem:[%s1151 + $0x1c] sm:$0xf]
    %v1160 = vld [vmem:[%s1151 + $0x20] sm:$0xf]
    %v1161 = vld [vmem:[%s1151 + $0x24] sm:$0xf]
    %v1162 = vld [vmem:[%s1151 + $0x28] sm:$0xf]
    %v1163 = vld [vmem:[%s1151 + $0x2c] sm:$0xf]
    %v1164 = vld [vmem:[%s1151 + $0x30] sm:$0xf]
    %v1165 = vld [vmem:[%s1151 + $0x34] sm:$0xf]
    %v1166 = vld [vmem:[%s1151 + $0x38] sm:$0xf]
    %v1167 = vld [vmem:[%s1151 + $0x3c] sm:$0xf]
    %v1168 = vpack.c.bf16 %v1102, %v1101
    %v1169 = vpack.c.bf16 %v1104, %v1103
    %v1170 = vpack.c.bf16 %v1106, %v1105
    %v1171 = vpack.c.bf16 %v1108, %v1107
    %v1172 = vpack.c.bf16 %v1110, %v1109
    %v1173 = vpack.c.bf16 %v1112, %v1111
    %v1174 = vpack.c.bf16 %v1114, %v1113
    %v1175 = vpack.c.bf16 %v1116, %v1115
    %s1176 = scalar_lea.vmem %s5, 256
    %v1177 = vld [vmem:[%s1176] sm:$0xf]
    %v1178 = vld [vmem:[%s1176 + $0x4] sm:$0xf]
    %v1179 = vld [vmem:[%s1176 + $0x8] sm:$0xf]
    %v1180 = vld [vmem:[%s1176 + $0xc] sm:$0xf]
    %v1181 = vld [vmem:[%s1176 + $0x10] sm:$0xf]
    %v1182 = vld [vmem:[%s1176 + $0x14] sm:$0xf]
    %v1183 = vld [vmem:[%s1176 + $0x18] sm:$0xf]
    %v1184 = vld [vmem:[%s1176 + $0x1c] sm:$0xf]
    %v1185 = vld [vmem:[%s1176 + $0x20] sm:$0xf]
    %v1186 = vld [vmem:[%s1176 + $0x24] sm:$0xf]
    %v1187 = vld [vmem:[%s1176 + $0x28] sm:$0xf]
    %v1188 = vld [vmem:[%s1176 + $0x2c] sm:$0xf]
    %v1189 = vld [vmem:[%s1176 + $0x30] sm:$0xf]
    %v1190 = vld [vmem:[%s1176 + $0x34] sm:$0xf]
    %v1191 = vld [vmem:[%s1176 + $0x38] sm:$0xf]
    %v1192 = vld [vmem:[%s1176 + $0x3c] sm:$0xf]
    %v1209 = vunpack.c.l.b16 %v1177
    %v1210 = vunpack.c.l.b16 %v1178
    %v1211 = vunpack.c.l.b16 %v1179
    %v1212 = vunpack.c.l.b16 %v1180
    %v1213 = vunpack.c.l.b16 %v1181
    %v1214 = vunpack.c.l.b16 %v1182
    %v1215 = vunpack.c.l.b16 %v1183
    %v1216 = vunpack.c.l.b16 %v1184
    %v1217 = vunpack.c.l.b16 %v1185
    %v1218 = vunpack.c.l.b16 %v1186
    %v1219 = vunpack.c.l.b16 %v1187
    %v1220 = vunpack.c.l.b16 %v1188
    %v1221 = vunpack.c.l.b16 %v1189
    %v1222 = vunpack.c.l.b16 %v1190
    %v1223 = vunpack.c.l.b16 %v1191
    %v1224 = vunpack.c.l.b16 %v1192
    %v1225 = vpack.c.b16 %v1210, %v1209
    %v1226 = vpack.c.b16 %v1212, %v1211
    %v1227 = vpack.c.b16 %v1214, %v1213
    %v1228 = vpack.c.b16 %v1216, %v1215
    %v1229 = vpack.c.b16 %v1218, %v1217
    %v1230 = vpack.c.b16 %v1220, %v1219
    %v1231 = vpack.c.b16 %v1222, %v1221
    %v1232 = vpack.c.b16 %v1224, %v1223
    %1241 = vmatpush.bf16.msra.mxu0 %v1232
    %1242 = vmatpush.bf16.msra.mxu0 %v1231
    %1243 = vmatpush.bf16.msra.mxu0 %v1230
    %1244 = vmatpush.bf16.msra.mxu0 %v1229
    %1245 = vmatpush.bf16.msra.mxu0 %v1228
    %1246 = vmatpush.bf16.msra.mxu0 %v1227
    %1247 = vmatpush.bf16.msra.mxu0 %v1226
    %1248 = vmatpush.bf16.msra.mxu0 %v1225
    %1249 = vmatmul.bf16.gmra.mxu0 %v1168
    %v1250 = vpop.f32.mrf.mxu0
    %v1251 = vadd.f32 0.0, %v1250
    %v1252 = vpop.f32.mrf.mxu0
    %v1253 = vadd.f32 0.0, %v1252
    %1254 = vmatmul.bf16.gmra.mxu0 %v1169
    %v1255 = vpop.f32.mrf.mxu0
    %v1256 = vadd.f32 0.0, %v1255
    %v1257 = vpop.f32.mrf.mxu0
    %v1258 = vadd.f32 0.0, %v1257
    %1259 = vmatmul.bf16.gmra.mxu0 %v1170
    %v1260 = vpop.f32.mrf.mxu0
    %v1261 = vadd.f32 0.0, %v1260
    %v1262 = vpop.f32.mrf.mxu0
    %v1263 = vadd.f32 0.0, %v1262
    %1264 = vmatmul.bf16.gmra.mxu0 %v1171
    %v1265 = vpop.f32.mrf.mxu0
    %v1266 = vadd.f32 0.0, %v1265
    %v1267 = vpop.f32.mrf.mxu0
    %v1268 = vadd.f32 0.0, %v1267
    %1269 = vmatmul.bf16.gmra.mxu0 %v1172
    %v1270 = vpop.f32.mrf.mxu0
    %v1271 = vadd.f32 0.0, %v1270
    %v1272 = vpop.f32.mrf.mxu0
    %v1273 = vadd.f32 0.0, %v1272
    %1274 = vmatmul.bf16.gmra.mxu0 %v1173
    %v1275 = vpop.f32.mrf.mxu0
    %v1276 = vadd.f32 0.0, %v1275
    %v1277 = vpop.f32.mrf.mxu0
    %v1278 = vadd.f32 0.0, %v1277
    %1279 = vmatmul.bf16.gmra.mxu0 %v1174
    %v1280 = vpop.f32.mrf.mxu0
    %v1281 = vadd.f32 0.0, %v1280
    %v1282 = vpop.f32.mrf.mxu0
    %v1283 = vadd.f32 0.0, %v1282
    %1284 = vmatmul.bf16.gmra.mxu0 %v1175
    %v1285 = vpop.f32.mrf.mxu0
    %v1286 = vadd.f32 0.0, %v1285
    %v1287 = vpop.f32.mrf.mxu0
    %v1288 = vadd.f32 0.0, %v1287
    %1289 = vdwg.mxu0
    %v1290 = vpack.c.bf16 %v1253, %v1251
    %v1291 = vpack.c.bf16 %v1258, %v1256
    %v1292 = vpack.c.bf16 %v1263, %v1261
    %v1293 = vpack.c.bf16 %v1268, %v1266
    %v1294 = vpack.c.bf16 %v1273, %v1271
    %v1295 = vpack.c.bf16 %v1278, %v1276
    %v1296 = vpack.c.bf16 %v1283, %v1281
    %v1297 = vpack.c.bf16 %v1288, %v1286
    %s1298 = scalar_lea.vmem %s6, 4
    %v1299 = vld [vmem:[%s1298] sm:$0x1]
    %v1301 = vperm.slane %v1299, 0
    %v1319 = vunpack.c.l.b16 %v1152
    %v1320 = vunpack.c.l.b16 %v1153
    %v1321 = vunpack.c.l.b16 %v1154
    %v1322 = vunpack.c.l.b16 %v1155
    %v1323 = vunpack.c.l.b16 %v1156
    %v1324 = vunpack.c.l.b16 %v1157
    %v1325 = vunpack.c.l.b16 %v1158
    %v1326 = vunpack.c.l.b16 %v1159
    %v1327 = vunpack.c.l.b16 %v1160
    %v1328 = vunpack.c.l.b16 %v1161
    %v1329 = vunpack.c.l.b16 %v1162
    %v1330 = vunpack.c.l.b16 %v1163
    %v1331 = vunpack.c.l.b16 %v1164
    %v1332 = vunpack.c.l.b16 %v1165
    %v1333 = vunpack.c.l.b16 %v1166
    %v1334 = vunpack.c.l.b16 %v1167
    %v1335 = vpack.c.b16 %v1320, %v1319
    %v1336 = vpack.c.b16 %v1322, %v1321
    %v1337 = vpack.c.b16 %v1324, %v1323
    %v1338 = vpack.c.b16 %v1326, %v1325
    %v1339 = vpack.c.b16 %v1328, %v1327
    %v1340 = vpack.c.b16 %v1330, %v1329
    %v1341 = vpack.c.b16 %v1332, %v1331
    %v1342 = vpack.c.b16 %v1334, %v1333
    %1351 = vmatpush.bf16.msra.mxu0 %v1297
    %1352 = vmatpush.bf16.msra.mxu0 %v1296
    %1353 = vmatpush.bf16.msra.mxu0 %v1295
    %1354 = vmatpush.bf16.msra.mxu0 %v1294
    %1355 = vmatpush.bf16.msra.mxu0 %v1293
    %1356 = vmatpush.bf16.msra.mxu0 %v1292
    %1357 = vmatpush.bf16.msra.mxu0 %v1291
    %1358 = vmatpush.bf16.msra.mxu0 %v1290
    %1359 = vmatmul.bf16.gmra.mxu0 %v1335
    %v1360 = vpop.f32.mrf.mxu0
    %v1361 = vadd.f32 %v1301, %v1360
    %v1362 = vpop.f32.mrf.mxu0
    %v1363 = vadd.f32 %v1301, %v1362
    %1364 = vmatmul.bf16.gmra.mxu0 %v1336
    %v1365 = vpop.f32.mrf.mxu0
    %v1366 = vadd.f32 %v1301, %v1365
    %v1367 = vpop.f32.mrf.mxu0
    %v1368 = vadd.f32 %v1301, %v1367
    %1369 = vmatmul.bf16.gmra.mxu0 %v1337
    %v1370 = vpop.f32.mrf.mxu0
    %v1371 = vadd.f32 %v1301, %v1370
    %v1372 = vpop.f32.mrf.mxu0
    %v1373 = vadd.f32 %v1301, %v1372
    %1374 = vmatmul.bf16.gmra.mxu0 %v1338
    %v1375 = vpop.f32.mrf.mxu0
    %v1376 = vadd.f32 %v1301, %v1375
    %v1377 = vpop.f32.mrf.mxu0
    %v1378 = vadd.f32 %v1301, %v1377
    %1379 = vmatmul.bf16.gmra.mxu0 %v1339
    %v1380 = vpop.f32.mrf.mxu0
    %v1381 = vadd.f32 %v1301, %v1380
    %v1382 = vpop.f32.mrf.mxu0
    %v1383 = vadd.f32 %v1301, %v1382
    %1384 = vmatmul.bf16.gmra.mxu0 %v1340
    %v1385 = vpop.f32.mrf.mxu0
    %v1386 = vadd.f32 %v1301, %v1385
    %v1387 = vpop.f32.mrf.mxu0
    %v1388 = vadd.f32 %v1301, %v1387
    %1389 = vmatmul.bf16.gmra.mxu0 %v1341
    %v1390 = vpop.f32.mrf.mxu0
    %v1391 = vadd.f32 %v1301, %v1390
    %v1392 = vpop.f32.mrf.mxu0
    %v1393 = vadd.f32 %v1301, %v1392
    %1394 = vmatmul.bf16.gmra.mxu0 %v1342
    %v1395 = vpop.f32.mrf.mxu0
    %v1396 = vadd.f32 %v1301, %v1395
    %v1397 = vpop.f32.mrf.mxu0
    %v1398 = vadd.f32 %v1301, %v1397
    %1399 = vdwg.mxu0
    %v1400 = vmax.f32 %v1361, 0.0
    %v1401 = vmax.f32 %v1363, 0.0
    %v1402 = vmax.f32 %v1366, 0.0
    %v1403 = vmax.f32 %v1368, 0.0
    %v1404 = vmax.f32 %v1371, 0.0
    %v1405 = vmax.f32 %v1373, 0.0
    %v1406 = vmax.f32 %v1376, 0.0
    %v1407 = vmax.f32 %v1378, 0.0
    %v1408 = vmax.f32 %v1381, 0.0
    %v1409 = vmax.f32 %v1383, 0.0
    %v1410 = vmax.f32 %v1386, 0.0
    %v1411 = vmax.f32 %v1388, 0.0
    %v1412 = vmax.f32 %v1391, 0.0
    %v1413 = vmax.f32 %v1393, 0.0
    %v1414 = vmax.f32 %v1396, 0.0
    %v1415 = vmax.f32 %v1398, 0.0
    %s1416 = sld [smem:[#allocation2 + $0x4]]
    %v1417 = vstv %s1416
    %v1418 = vmul.f32 %v1400, %v1417
    %v1419 = vmul.f32 %v1401, %v1417
    %v1420 = vmul.f32 %v1402, %v1417
    %v1421 = vmul.f32 %v1403, %v1417
    %v1422 = vmul.f32 %v1404, %v1417
    %v1423 = vmul.f32 %v1405, %v1417
    %v1424 = vmul.f32 %v1406, %v1417
    %v1425 = vmul.f32 %v1407, %v1417
    %v1426 = vmul.f32 %v1408, %v1417
    %v1427 = vmul.f32 %v1409, %v1417
    %v1428 = vmul.f32 %v1410, %v1417
    %v1429 = vmul.f32 %v1411, %v1417
    %v1430 = vmul.f32 %v1412, %v1417
    %v1431 = vmul.f32 %v1413, %v1417
    %v1432 = vmul.f32 %v1414, %v1417
    %v1433 = vmul.f32 %v1415, %v1417
    %v1434 = vadd.f32 %v1135, %v1418
    %v1435 = vadd.f32 %v1136, %v1419
    %v1436 = vadd.f32 %v1137, %v1420
    %v1437 = vadd.f32 %v1138, %v1421
    %v1438 = vadd.f32 %v1139, %v1422
    %v1439 = vadd.f32 %v1140, %v1423
    %v1440 = vadd.f32 %v1141, %v1424
    %v1441 = vadd.f32 %v1142, %v1425
    %v1442 = vadd.f32 %v1143, %v1426
    %v1443 = vadd.f32 %v1144, %v1427
    %v1444 = vadd.f32 %v1145, %v1428
    %v1445 = vadd.f32 %v1146, %v1429
    %v1446 = vadd.f32 %v1147, %v1430
    %v1447 = vadd.f32 %v1148, %v1431
    %v1448 = vadd.f32 %v1149, %v1432
    %v1449 = vadd.f32 %v1150, %v1433
    %v1450 = vpack.c.bf16 %v1401, %v1400
    %v1451 = vpack.c.bf16 %v1403, %v1402
    %v1452 = vpack.c.bf16 %v1405, %v1404
    %v1453 = vpack.c.bf16 %v1407, %v1406
    %v1454 = vpack.c.bf16 %v1409, %v1408
    %v1455 = vpack.c.bf16 %v1411, %v1410
    %v1456 = vpack.c.bf16 %v1413, %v1412
    %v1457 = vpack.c.bf16 %v1415, %v1414
    %s1458 = scalar_lea.vmem %s5, 320
    %v1459 = vld [vmem:[%s1458] sm:$0xf]
    %v1460 = vld [vmem:[%s1458 + $0x4] sm:$0xf]
    %v1461 = vld [vmem:[%s1458 + $0x8] sm:$0xf]
    %v1462 = vld [vmem:[%s1458 + $0xc] sm:$0xf]
    %v1463 = vld [vmem:[%s1458 + $0x10] sm:$0xf]
    %v1464 = vld [vmem:[%s1458 + $0x14] sm:$0xf]
    %v1465 = vld [vmem:[%s1458 + $0x18] sm:$0xf]
    %v1466 = vld [vmem:[%s1458 + $0x1c] sm:$0xf]
    %v1467 = vld [vmem:[%s1458 + $0x20] sm:$0xf]
    %v1468 = vld [vmem:[%s1458 + $0x24] sm:$0xf]
    %v1469 = vld [vmem:[%s1458 + $0x28] sm:$0xf]
    %v1470 = vld [vmem:[%s1458 + $0x2c] sm:$0xf]
    %v1471 = vld [vmem:[%s1458 + $0x30] sm:$0xf]
    %v1472 = vld [vmem:[%s1458 + $0x34] sm:$0xf]
    %v1473 = vld [vmem:[%s1458 + $0x38] sm:$0xf]
    %v1474 = vld [vmem:[%s1458 + $0x3c] sm:$0xf]
    %v1491 = vunpack.c.l.b16 %v1459
    %v1492 = vunpack.c.l.b16 %v1460
    %v1493 = vunpack.c.l.b16 %v1461
    %v1494 = vunpack.c.l.b16 %v1462
    %v1495 = vunpack.c.l.b16 %v1463
    %v1496 = vunpack.c.l.b16 %v1464
    %v1497 = vunpack.c.l.b16 %v1465
    %v1498 = vunpack.c.l.b16 %v1466
    %v1499 = vunpack.c.l.b16 %v1467
    %v1500 = vunpack.c.l.b16 %v1468
    %v1501 = vunpack.c.l.b16 %v1469
    %v1502 = vunpack.c.l.b16 %v1470
    %v1503 = vunpack.c.l.b16 %v1471
    %v1504 = vunpack.c.l.b16 %v1472
    %v1505 = vunpack.c.l.b16 %v1473
    %v1506 = vunpack.c.l.b16 %v1474
    %v1507 = vpack.c.b16 %v1492, %v1491
    %v1508 = vpack.c.b16 %v1494, %v1493
    %v1509 = vpack.c.b16 %v1496, %v1495
    %v1510 = vpack.c.b16 %v1498, %v1497
    %v1511 = vpack.c.b16 %v1500, %v1499
    %v1512 = vpack.c.b16 %v1502, %v1501
    %v1513 = vpack.c.b16 %v1504, %v1503
    %v1514 = vpack.c.b16 %v1506, %v1505
    %1523 = vmatpush.bf16.msra.mxu0 %v1514
    %1524 = vmatpush.bf16.msra.mxu0 %v1513
    %1525 = vmatpush.bf16.msra.mxu0 %v1512
    %1526 = vmatpush.bf16.msra.mxu0 %v1511
    %1527 = vmatpush.bf16.msra.mxu0 %v1510
    %1528 = vmatpush.bf16.msra.mxu0 %v1509
    %1529 = vmatpush.bf16.msra.mxu0 %v1508
    %1530 = vmatpush.bf16.msra.mxu0 %v1507
    %1531 = vmatmul.bf16.gmra.mxu0 %v1450
    %v1532 = vpop.f32.mrf.mxu0
    %v1533 = vadd.f32 0.0, %v1532
    %v1534 = vpop.f32.mrf.mxu0
    %v1535 = vadd.f32 0.0, %v1534
    %1536 = vmatmul.bf16.gmra.mxu0 %v1451
    %v1537 = vpop.f32.mrf.mxu0
    %v1538 = vadd.f32 0.0, %v1537
    %v1539 = vpop.f32.mrf.mxu0
    %v1540 = vadd.f32 0.0, %v1539
    %1541 = vmatmul.bf16.gmra.mxu0 %v1452
    %v1542 = vpop.f32.mrf.mxu0
    %v1543 = vadd.f32 0.0, %v1542
    %v1544 = vpop.f32.mrf.mxu0
    %v1545 = vadd.f32 0.0, %v1544
    %1546 = vmatmul.bf16.gmra.mxu0 %v1453
    %v1547 = vpop.f32.mrf.mxu0
    %v1548 = vadd.f32 0.0, %v1547
    %v1549 = vpop.f32.mrf.mxu0
    %v1550 = vadd.f32 0.0, %v1549
    %1551 = vmatmul.bf16.gmra.mxu0 %v1454
    %v1552 = vpop.f32.mrf.mxu0
    %v1553 = vadd.f32 0.0, %v1552
    %v1554 = vpop.f32.mrf.mxu0
    %v1555 = vadd.f32 0.0, %v1554
    %1556 = vmatmul.bf16.gmra.mxu0 %v1455
    %v1557 = vpop.f32.mrf.mxu0
    %v1558 = vadd.f32 0.0, %v1557
    %v1559 = vpop.f32.mrf.mxu0
    %v1560 = vadd.f32 0.0, %v1559
    %1561 = vmatmul.bf16.gmra.mxu0 %v1456
    %v1562 = vpop.f32.mrf.mxu0
    %v1563 = vadd.f32 0.0, %v1562
    %v1564 = vpop.f32.mrf.mxu0
    %v1565 = vadd.f32 0.0, %v1564
    %1566 = vmatmul.bf16.gmra.mxu0 %v1457
    %v1567 = vpop.f32.mrf.mxu0
    %v1568 = vadd.f32 0.0, %v1567
    %v1569 = vpop.f32.mrf.mxu0
    %v1570 = vadd.f32 0.0, %v1569
    %1571 = vdwg.mxu0
    %v1572 = vpack.c.bf16 %v1535, %v1533
    %v1573 = vpack.c.bf16 %v1540, %v1538
    %v1574 = vpack.c.bf16 %v1545, %v1543
    %v1575 = vpack.c.bf16 %v1550, %v1548
    %v1576 = vpack.c.bf16 %v1555, %v1553
    %v1577 = vpack.c.bf16 %v1560, %v1558
    %v1578 = vpack.c.bf16 %v1565, %v1563
    %v1579 = vpack.c.bf16 %v1570, %v1568
    %s1580 = scalar_lea.vmem %s6, 5
    %v1581 = vld [vmem:[%s1580] sm:$0x1]
    %v1583 = vperm.slane %v1581, 0
    %1585 = vmatpush.bf16.msra.mxu0 %v1579
    %1586 = vmatpush.bf16.msra.mxu0 %v1578
    %1587 = vmatpush.bf16.msra.mxu0 %v1577
    %1588 = vmatpush.bf16.msra.mxu0 %v1576
    %1589 = vmatpush.bf16.msra.mxu0 %v1575
    %1590 = vmatpush.bf16.msra.mxu0 %v1574
    %1591 = vmatpush.bf16.msra.mxu0 %v1573
    %1592 = vmatpush.bf16.msra.mxu0 %v1572
    %1593 = vmatmul.bf16.gmra.mxu0 %v1335
    %v1594 = vpop.f32.mrf.mxu0
    %v1595 = vadd.f32 %v1583, %v1594
    %v1596 = vpop.f32.mrf.mxu0
    %v1597 = vadd.f32 %v1583, %v1596
    %1598 = vmatmul.bf16.gmra.mxu0 %v1336
    %v1599 = vpop.f32.mrf.mxu0
    %v1600 = vadd.f32 %v1583, %v1599
    %v1601 = vpop.f32.mrf.mxu0
    %v1602 = vadd.f32 %v1583, %v1601
    %1603 = vmatmul.bf16.gmra.mxu0 %v1337
    %v1604 = vpop.f32.mrf.mxu0
    %v1605 = vadd.f32 %v1583, %v1604
    %v1606 = vpop.f32.mrf.mxu0
    %v1607 = vadd.f32 %v1583, %v1606
    %1608 = vmatmul.bf16.gmra.mxu0 %v1338
    %v1609 = vpop.f32.mrf.mxu0
    %v1610 = vadd.f32 %v1583, %v1609
    %v1611 = vpop.f32.mrf.mxu0
    %v1612 = vadd.f32 %v1583, %v1611
    %1613 = vmatmul.bf16.gmra.mxu0 %v1339
    %v1614 = vpop.f32.mrf.mxu0
    %v1615 = vadd.f32 %v1583, %v1614
    %v1616 = vpop.f32.mrf.mxu0
    %v1617 = vadd.f32 %v1583, %v1616
    %1618 = vmatmul.bf16.gmra.mxu0 %v1340
    %v1619 = vpop.f32.mrf.mxu0
    %v1620 = vadd.f32 %v1583, %v1619
    %v1621 = vpop.f32.mrf.mxu0
    %v1622 = vadd.f32 %v1583, %v1621
    %1623 = vmatmul.bf16.gmra.mxu0 %v1341
    %v1624 = vpop.f32.mrf.mxu0
    %v1625 = vadd.f32 %v1583, %v1624
    %v1626 = vpop.f32.mrf.mxu0
    %v1627 = vadd.f32 %v1583, %v1626
    %1628 = vmatmul.bf16.gmra.mxu0 %v1342
    %v1629 = vpop.f32.mrf.mxu0
    %v1630 = vadd.f32 %v1583, %v1629
    %v1631 = vpop.f32.mrf.mxu0
    %v1632 = vadd.f32 %v1583, %v1631
    %1633 = vdwg.mxu0
    %v1634 = vmax.f32 %v1595, 0.0
    %v1635 = vmax.f32 %v1597, 0.0
    %v1636 = vmax.f32 %v1600, 0.0
    %v1637 = vmax.f32 %v1602, 0.0
    %v1638 = vmax.f32 %v1605, 0.0
    %v1639 = vmax.f32 %v1607, 0.0
    %v1640 = vmax.f32 %v1610, 0.0
    %v1641 = vmax.f32 %v1612, 0.0
    %v1642 = vmax.f32 %v1615, 0.0
    %v1643 = vmax.f32 %v1617, 0.0
    %v1644 = vmax.f32 %v1620, 0.0
    %v1645 = vmax.f32 %v1622, 0.0
    %v1646 = vmax.f32 %v1625, 0.0
    %v1647 = vmax.f32 %v1627, 0.0
    %v1648 = vmax.f32 %v1630, 0.0
    %v1649 = vmax.f32 %v1632, 0.0
    %s1650 = sld [smem:[#allocation2 + $0x5]]
    %v1651 = vstv %s1650
    %v1652 = vmul.f32 %v1634, %v1651
    %v1653 = vmul.f32 %v1635, %v1651
    %v1654 = vmul.f32 %v1636, %v1651
    %v1655 = vmul.f32 %v1637, %v1651
    %v1656 = vmul.f32 %v1638, %v1651
    %v1657 = vmul.f32 %v1639, %v1651
    %v1658 = vmul.f32 %v1640, %v1651
    %v1659 = vmul.f32 %v1641, %v1651
    %v1660 = vmul.f32 %v1642, %v1651
    %v1661 = vmul.f32 %v1643, %v1651
    %v1662 = vmul.f32 %v1644, %v1651
    %v1663 = vmul.f32 %v1645, %v1651
    %v1664 = vmul.f32 %v1646, %v1651
    %v1665 = vmul.f32 %v1647, %v1651
    %v1666 = vmul.f32 %v1648, %v1651
    %v1667 = vmul.f32 %v1649, %v1651
    %v1668 = vadd.f32 %v1434, %v1652
    %v1669 = vadd.f32 %v1435, %v1653
    %v1670 = vadd.f32 %v1436, %v1654
    %v1671 = vadd.f32 %v1437, %v1655
    %v1672 = vadd.f32 %v1438, %v1656
    %v1673 = vadd.f32 %v1439, %v1657
    %v1674 = vadd.f32 %v1440, %v1658
    %v1675 = vadd.f32 %v1441, %v1659
    %v1676 = vadd.f32 %v1442, %v1660
    %v1677 = vadd.f32 %v1443, %v1661
    %v1678 = vadd.f32 %v1444, %v1662
    %v1679 = vadd.f32 %v1445, %v1663
    %v1680 = vadd.f32 %v1446, %v1664
    %v1681 = vadd.f32 %v1447, %v1665
    %v1682 = vadd.f32 %v1448, %v1666
    %v1683 = vadd.f32 %v1449, %v1667
    %v1684 = vpack.c.bf16 %v1635, %v1634
    %v1685 = vpack.c.bf16 %v1637, %v1636
    %v1686 = vpack.c.bf16 %v1639, %v1638
    %v1687 = vpack.c.bf16 %v1641, %v1640
    %v1688 = vpack.c.bf16 %v1643, %v1642
    %v1689 = vpack.c.bf16 %v1645, %v1644
    %v1690 = vpack.c.bf16 %v1647, %v1646
    %v1691 = vpack.c.bf16 %v1649, %v1648
    %s1692 = scalar_lea.vmem %s5, 384
    %v1693 = vld [vmem:[%s1692] sm:$0xf]
    %v1694 = vld [vmem:[%s1692 + $0x4] sm:$0xf]
    %v1695 = vld [vmem:[%s1692 + $0x8] sm:$0xf]
    %v1696 = vld [vmem:[%s1692 + $0xc] sm:$0xf]
    %v1697 = vld [vmem:[%s1692 + $0x10] sm:$0xf]
    %v1698 = vld [vmem:[%s1692 + $0x14] sm:$0xf]
    %v1699 = vld [vmem:[%s1692 + $0x18] sm:$0xf]
    %v1700 = vld [vmem:[%s1692 + $0x1c] sm:$0xf]
    %v1701 = vld [vmem:[%s1692 + $0x20] sm:$0xf]
    %v1702 = vld [vmem:[%s1692 + $0x24] sm:$0xf]
    %v1703 = vld [vmem:[%s1692 + $0x28] sm:$0xf]
    %v1704 = vld [vmem:[%s1692 + $0x2c] sm:$0xf]
    %v1705 = vld [vmem:[%s1692 + $0x30] sm:$0xf]
    %v1706 = vld [vmem:[%s1692 + $0x34] sm:$0xf]
    %v1707 = vld [vmem:[%s1692 + $0x38] sm:$0xf]
    %v1708 = vld [vmem:[%s1692 + $0x3c] sm:$0xf]
    %v1725 = vunpack.c.l.b16 %v1693
    %v1726 = vunpack.c.l.b16 %v1694
    %v1727 = vunpack.c.l.b16 %v1695
    %v1728 = vunpack.c.l.b16 %v1696
    %v1729 = vunpack.c.l.b16 %v1697
    %v1730 = vunpack.c.l.b16 %v1698
    %v1731 = vunpack.c.l.b16 %v1699
    %v1732 = vunpack.c.l.b16 %v1700
    %v1733 = vunpack.c.l.b16 %v1701
    %v1734 = vunpack.c.l.b16 %v1702
    %v1735 = vunpack.c.l.b16 %v1703
    %v1736 = vunpack.c.l.b16 %v1704
    %v1737 = vunpack.c.l.b16 %v1705
    %v1738 = vunpack.c.l.b16 %v1706
    %v1739 = vunpack.c.l.b16 %v1707
    %v1740 = vunpack.c.l.b16 %v1708
    %v1741 = vpack.c.b16 %v1726, %v1725
    %v1742 = vpack.c.b16 %v1728, %v1727
    %v1743 = vpack.c.b16 %v1730, %v1729
    %v1744 = vpack.c.b16 %v1732, %v1731
    %v1745 = vpack.c.b16 %v1734, %v1733
    %v1746 = vpack.c.b16 %v1736, %v1735
    %v1747 = vpack.c.b16 %v1738, %v1737
    %v1748 = vpack.c.b16 %v1740, %v1739
    %1757 = vmatpush.bf16.msra.mxu0 %v1748
    %1758 = vmatpush.bf16.msra.mxu0 %v1747
    %1759 = vmatpush.bf16.msra.mxu0 %v1746
    %1760 = vmatpush.bf16.msra.mxu0 %v1745
    %1761 = vmatpush.bf16.msra.mxu0 %v1744
    %1762 = vmatpush.bf16.msra.mxu0 %v1743
    %1763 = vmatpush.bf16.msra.mxu0 %v1742
    %1764 = vmatpush.bf16.msra.mxu0 %v1741
    %1765 = vmatmul.bf16.gmra.mxu0 %v1684
    %v1766 = vpop.f32.mrf.mxu0
    %v1767 = vadd.f32 0.0, %v1766
    %v1768 = vpop.f32.mrf.mxu0
    %v1769 = vadd.f32 0.0, %v1768
    %1770 = vmatmul.bf16.gmra.mxu0 %v1685
    %v1771 = vpop.f32.mrf.mxu0
    %v1772 = vadd.f32 0.0, %v1771
    %v1773 = vpop.f32.mrf.mxu0
    %v1774 = vadd.f32 0.0, %v1773
    %1775 = vmatmul.bf16.gmra.mxu0 %v1686
    %v1776 = vpop.f32.mrf.mxu0
    %v1777 = vadd.f32 0.0, %v1776
    %v1778 = vpop.f32.mrf.mxu0
    %v1779 = vadd.f32 0.0, %v1778
    %1780 = vmatmul.bf16.gmra.mxu0 %v1687
    %v1781 = vpop.f32.mrf.mxu0
    %v1782 = vadd.f32 0.0, %v1781
    %v1783 = vpop.f32.mrf.mxu0
    %v1784 = vadd.f32 0.0, %v1783
    %1785 = vmatmul.bf16.gmra.mxu0 %v1688
    %v1786 = vpop.f32.mrf.mxu0
    %v1787 = vadd.f32 0.0, %v1786
    %v1788 = vpop.f32.mrf.mxu0
    %v1789 = vadd.f32 0.0, %v1788
    %1790 = vmatmul.bf16.gmra.mxu0 %v1689
    %v1791 = vpop.f32.mrf.mxu0
    %v1792 = vadd.f32 0.0, %v1791
    %v1793 = vpop.f32.mrf.mxu0
    %v1794 = vadd.f32 0.0, %v1793
    %1795 = vmatmul.bf16.gmra.mxu0 %v1690
    %v1796 = vpop.f32.mrf.mxu0
    %v1797 = vadd.f32 0.0, %v1796
    %v1798 = vpop.f32.mrf.mxu0
    %v1799 = vadd.f32 0.0, %v1798
    %1800 = vmatmul.bf16.gmra.mxu0 %v1691
    %v1801 = vpop.f32.mrf.mxu0
    %v1802 = vadd.f32 0.0, %v1801
    %v1803 = vpop.f32.mrf.mxu0
    %v1804 = vadd.f32 0.0, %v1803
    %1805 = vdwg.mxu0
    %v1806 = vpack.c.bf16 %v1769, %v1767
    %v1807 = vpack.c.bf16 %v1774, %v1772
    %v1808 = vpack.c.bf16 %v1779, %v1777
    %v1809 = vpack.c.bf16 %v1784, %v1782
    %v1810 = vpack.c.bf16 %v1789, %v1787
    %v1811 = vpack.c.bf16 %v1794, %v1792
    %v1812 = vpack.c.bf16 %v1799, %v1797
    %v1813 = vpack.c.bf16 %v1804, %v1802
    %s1814 = scalar_lea.vmem %s6, 6
    %v1815 = vld [vmem:[%s1814] sm:$0x1]
    %v1817 = vperm.slane %v1815, 0
    %1819 = vmatpush.bf16.msra.mxu0 %v1813
    %1820 = vmatpush.bf16.msra.mxu0 %v1812
    %1821 = vmatpush.bf16.msra.mxu0 %v1811
    %1822 = vmatpush.bf16.msra.mxu0 %v1810
    %1823 = vmatpush.bf16.msra.mxu0 %v1809
    %1824 = vmatpush.bf16.msra.mxu0 %v1808
    %1825 = vmatpush.bf16.msra.mxu0 %v1807
    %1826 = vmatpush.bf16.msra.mxu0 %v1806
    %1827 = vmatmul.bf16.gmra.mxu0 %v1335
    %v1828 = vpop.f32.mrf.mxu0
    %v1829 = vadd.f32 %v1817, %v1828
    %v1830 = vpop.f32.mrf.mxu0
    %v1831 = vadd.f32 %v1817, %v1830
    %1832 = vmatmul.bf16.gmra.mxu0 %v1336
    %v1833 = vpop.f32.mrf.mxu0
    %v1834 = vadd.f32 %v1817, %v1833
    %v1835 = vpop.f32.mrf.mxu0
    %v1836 = vadd.f32 %v1817, %v1835
    %1837 = vmatmul.bf16.gmra.mxu0 %v1337
    %v1838 = vpop.f32.mrf.mxu0
    %v1839 = vadd.f32 %v1817, %v1838
    %v1840 = vpop.f32.mrf.mxu0
    %v1841 = vadd.f32 %v1817, %v1840
    %1842 = vmatmul.bf16.gmra.mxu0 %v1338
    %v1843 = vpop.f32.mrf.mxu0
    %v1844 = vadd.f32 %v1817, %v1843
    %v1845 = vpop.f32.mrf.mxu0
    %v1846 = vadd.f32 %v1817, %v1845
    %1847 = vmatmul.bf16.gmra.mxu0 %v1339
    %v1848 = vpop.f32.mrf.mxu0
    %v1849 = vadd.f32 %v1817, %v1848
    %v1850 = vpop.f32.mrf.mxu0
    %v1851 = vadd.f32 %v1817, %v1850
    %1852 = vmatmul.bf16.gmra.mxu0 %v1340
    %v1853 = vpop.f32.mrf.mxu0
    %v1854 = vadd.f32 %v1817, %v1853
    %v1855 = vpop.f32.mrf.mxu0
    %v1856 = vadd.f32 %v1817, %v1855
    %1857 = vmatmul.bf16.gmra.mxu0 %v1341
    %v1858 = vpop.f32.mrf.mxu0
    %v1859 = vadd.f32 %v1817, %v1858
    %v1860 = vpop.f32.mrf.mxu0
    %v1861 = vadd.f32 %v1817, %v1860
    %1862 = vmatmul.bf16.gmra.mxu0 %v1342
    %v1863 = vpop.f32.mrf.mxu0
    %v1864 = vadd.f32 %v1817, %v1863
    %v1865 = vpop.f32.mrf.mxu0
    %v1866 = vadd.f32 %v1817, %v1865
    %1867 = vdwg.mxu0
    %v1868 = vmax.f32 %v1829, 0.0
    %v1869 = vmax.f32 %v1831, 0.0
    %v1870 = vmax.f32 %v1834, 0.0
    %v1871 = vmax.f32 %v1836, 0.0
    %v1872 = vmax.f32 %v1839, 0.0
    %v1873 = vmax.f32 %v1841, 0.0
    %v1874 = vmax.f32 %v1844, 0.0
    %v1875 = vmax.f32 %v1846, 0.0
    %v1876 = vmax.f32 %v1849, 0.0
    %v1877 = vmax.f32 %v1851, 0.0
    %v1878 = vmax.f32 %v1854, 0.0
    %v1879 = vmax.f32 %v1856, 0.0
    %v1880 = vmax.f32 %v1859, 0.0
    %v1881 = vmax.f32 %v1861, 0.0
    %v1882 = vmax.f32 %v1864, 0.0
    %v1883 = vmax.f32 %v1866, 0.0
    %s1884 = sld [smem:[#allocation2 + $0x6]]
    %v1885 = vstv %s1884
    %v1886 = vmul.f32 %v1868, %v1885
    %v1887 = vmul.f32 %v1869, %v1885
    %v1888 = vmul.f32 %v1870, %v1885
    %v1889 = vmul.f32 %v1871, %v1885
    %v1890 = vmul.f32 %v1872, %v1885
    %v1891 = vmul.f32 %v1873, %v1885
    %v1892 = vmul.f32 %v1874, %v1885
    %v1893 = vmul.f32 %v1875, %v1885
    %v1894 = vmul.f32 %v1876, %v1885
    %v1895 = vmul.f32 %v1877, %v1885
    %v1896 = vmul.f32 %v1878, %v1885
    %v1897 = vmul.f32 %v1879, %v1885
    %v1898 = vmul.f32 %v1880, %v1885
    %v1899 = vmul.f32 %v1881, %v1885
    %v1900 = vmul.f32 %v1882, %v1885
    %v1901 = vmul.f32 %v1883, %v1885
    %v1902 = vadd.f32 %v1668, %v1886
    %v1903 = vadd.f32 %v1669, %v1887
    %v1904 = vadd.f32 %v1670, %v1888
    %v1905 = vadd.f32 %v1671, %v1889
    %v1906 = vadd.f32 %v1672, %v1890
    %v1907 = vadd.f32 %v1673, %v1891
    %v1908 = vadd.f32 %v1674, %v1892
    %v1909 = vadd.f32 %v1675, %v1893
    %v1910 = vadd.f32 %v1676, %v1894
    %v1911 = vadd.f32 %v1677, %v1895
    %v1912 = vadd.f32 %v1678, %v1896
    %v1913 = vadd.f32 %v1679, %v1897
    %v1914 = vadd.f32 %v1680, %v1898
    %v1915 = vadd.f32 %v1681, %v1899
    %v1916 = vadd.f32 %v1682, %v1900
    %v1917 = vadd.f32 %v1683, %v1901
    %v1918 = vpack.c.bf16 %v1869, %v1868
    %v1919 = vpack.c.bf16 %v1871, %v1870
    %v1920 = vpack.c.bf16 %v1873, %v1872
    %v1921 = vpack.c.bf16 %v1875, %v1874
    %v1922 = vpack.c.bf16 %v1877, %v1876
    %v1923 = vpack.c.bf16 %v1879, %v1878
    %v1924 = vpack.c.bf16 %v1881, %v1880
    %v1925 = vpack.c.bf16 %v1883, %v1882
    %s1926 = scalar_lea.vmem %s5, 448
    %v1927 = vld [vmem:[%s1926] sm:$0xf]
    %v1928 = vld [vmem:[%s1926 + $0x4] sm:$0xf]
    %v1929 = vld [vmem:[%s1926 + $0x8] sm:$0xf]
    %v1930 = vld [vmem:[%s1926 + $0xc] sm:$0xf]
    %v1931 = vld [vmem:[%s1926 + $0x10] sm:$0xf]
    %v1932 = vld [vmem:[%s1926 + $0x14] sm:$0xf]
    %v1933 = vld [vmem:[%s1926 + $0x18] sm:$0xf]
    %v1934 = vld [vmem:[%s1926 + $0x1c] sm:$0xf]
    %v1935 = vld [vmem:[%s1926 + $0x20] sm:$0xf]
    %v1936 = vld [vmem:[%s1926 + $0x24] sm:$0xf]
    %v1937 = vld [vmem:[%s1926 + $0x28] sm:$0xf]
    %v1938 = vld [vmem:[%s1926 + $0x2c] sm:$0xf]
    %v1939 = vld [vmem:[%s1926 + $0x30] sm:$0xf]
    %v1940 = vld [vmem:[%s1926 + $0x34] sm:$0xf]
    %v1941 = vld [vmem:[%s1926 + $0x38] sm:$0xf]
    %v1942 = vld [vmem:[%s1926 + $0x3c] sm:$0xf]
    %v1959 = vunpack.c.l.b16 %v1927
    %v1960 = vunpack.c.l.b16 %v1928
    %v1961 = vunpack.c.l.b16 %v1929
    %v1962 = vunpack.c.l.b16 %v1930
    %v1963 = vunpack.c.l.b16 %v1931
    %v1964 = vunpack.c.l.b16 %v1932
    %v1965 = vunpack.c.l.b16 %v1933
    %v1966 = vunpack.c.l.b16 %v1934
    %v1967 = vunpack.c.l.b16 %v1935
    %v1968 = vunpack.c.l.b16 %v1936
    %v1969 = vunpack.c.l.b16 %v1937
    %v1970 = vunpack.c.l.b16 %v1938
    %v1971 = vunpack.c.l.b16 %v1939
    %v1972 = vunpack.c.l.b16 %v1940
    %v1973 = vunpack.c.l.b16 %v1941
    %v1974 = vunpack.c.l.b16 %v1942
    %v1975 = vpack.c.b16 %v1960, %v1959
    %v1976 = vpack.c.b16 %v1962, %v1961
    %v1977 = vpack.c.b16 %v1964, %v1963
    %v1978 = vpack.c.b16 %v1966, %v1965
    %v1979 = vpack.c.b16 %v1968, %v1967
    %v1980 = vpack.c.b16 %v1970, %v1969
    %v1981 = vpack.c.b16 %v1972, %v1971
    %v1982 = vpack.c.b16 %v1974, %v1973
    %1991 = vmatpush.bf16.msra.mxu0 %v1982
    %1992 = vmatpush.bf16.msra.mxu0 %v1981
    %1993 = vmatpush.bf16.msra.mxu0 %v1980
    %1994 = vmatpush.bf16.msra.mxu0 %v1979
    %1995 = vmatpush.bf16.msra.mxu0 %v1978
    %1996 = vmatpush.bf16.msra.mxu0 %v1977
    %1997 = vmatpush.bf16.msra.mxu0 %v1976
    %1998 = vmatpush.bf16.msra.mxu0 %v1975
    %1999 = vmatmul.bf16.gmra.mxu0 %v1918
    %v2000 = vpop.f32.mrf.mxu0
    %v2001 = vadd.f32 0.0, %v2000
    %v2002 = vpop.f32.mrf.mxu0
    %v2003 = vadd.f32 0.0, %v2002
    %2004 = vmatmul.bf16.gmra.mxu0 %v1919
    %v2005 = vpop.f32.mrf.mxu0
    %v2006 = vadd.f32 0.0, %v2005
    %v2007 = vpop.f32.mrf.mxu0
    %v2008 = vadd.f32 0.0, %v2007
    %2009 = vmatmul.bf16.gmra.mxu0 %v1920
    %v2010 = vpop.f32.mrf.mxu0
    %v2011 = vadd.f32 0.0, %v2010
    %v2012 = vpop.f32.mrf.mxu0
    %v2013 = vadd.f32 0.0, %v2012
    %2014 = vmatmul.bf16.gmra.mxu0 %v1921
    %v2015 = vpop.f32.mrf.mxu0
    %v2016 = vadd.f32 0.0, %v2015
    %v2017 = vpop.f32.mrf.mxu0
    %v2018 = vadd.f32 0.0, %v2017
    %2019 = vmatmul.bf16.gmra.mxu0 %v1922
    %v2020 = vpop.f32.mrf.mxu0
    %v2021 = vadd.f32 0.0, %v2020
    %v2022 = vpop.f32.mrf.mxu0
    %v2023 = vadd.f32 0.0, %v2022
    %2024 = vmatmul.bf16.gmra.mxu0 %v1923
    %v2025 = vpop.f32.mrf.mxu0
    %v2026 = vadd.f32 0.0, %v2025
    %v2027 = vpop.f32.mrf.mxu0
    %v2028 = vadd.f32 0.0, %v2027
    %2029 = vmatmul.bf16.gmra.mxu0 %v1924
    %v2030 = vpop.f32.mrf.mxu0
    %v2031 = vadd.f32 0.0, %v2030
    %v2032 = vpop.f32.mrf.mxu0
    %v2033 = vadd.f32 0.0, %v2032
    %2034 = vmatmul.bf16.gmra.mxu0 %v1925
    %v2035 = vpop.f32.mrf.mxu0
    %v2036 = vadd.f32 0.0, %v2035
    %v2037 = vpop.f32.mrf.mxu0
    %v2038 = vadd.f32 0.0, %v2037
    %2039 = vdwg.mxu0
    %v2040 = vpack.c.bf16 %v2003, %v2001
    %v2041 = vpack.c.bf16 %v2008, %v2006
    %v2042 = vpack.c.bf16 %v2013, %v2011
    %v2043 = vpack.c.bf16 %v2018, %v2016
    %v2044 = vpack.c.bf16 %v2023, %v2021
    %v2045 = vpack.c.bf16 %v2028, %v2026
    %v2046 = vpack.c.bf16 %v2033, %v2031
    %v2047 = vpack.c.bf16 %v2038, %v2036
    %s2048 = scalar_lea.vmem %s6, 7
    %v2049 = vld [vmem:[%s2048] sm:$0x1]
    %v2051 = vperm.slane %v2049, 0
    %2053 = vmatpush.bf16.msra.mxu0 %v2047
    %2054 = vmatpush.bf16.msra.mxu0 %v2046
    %2055 = vmatpush.bf16.msra.mxu0 %v2045
    %2056 = vmatpush.bf16.msra.mxu0 %v2044
    %2057 = vmatpush.bf16.msra.mxu0 %v2043
    %2058 = vmatpush.bf16.msra.mxu0 %v2042
    %2059 = vmatpush.bf16.msra.mxu0 %v2041
    %2060 = vmatpush.bf16.msra.mxu0 %v2040
    %2061 = vmatmul.bf16.gmra.mxu0 %v1335
    %v2062 = vpop.f32.mrf.mxu0
    %v2063 = vadd.f32 %v2051, %v2062
    %v2064 = vpop.f32.mrf.mxu0
    %v2065 = vadd.f32 %v2051, %v2064
    %2066 = vmatmul.bf16.gmra.mxu0 %v1336
    %v2067 = vpop.f32.mrf.mxu0
    %v2068 = vadd.f32 %v2051, %v2067
    %v2069 = vpop.f32.mrf.mxu0
    %v2070 = vadd.f32 %v2051, %v2069
    %2071 = vmatmul.bf16.gmra.mxu0 %v1337
    %v2072 = vpop.f32.mrf.mxu0
    %v2073 = vadd.f32 %v2051, %v2072
    %v2074 = vpop.f32.mrf.mxu0
    %v2075 = vadd.f32 %v2051, %v2074
    %2076 = vmatmul.bf16.gmra.mxu0 %v1338
    %v2077 = vpop.f32.mrf.mxu0
    %v2078 = vadd.f32 %v2051, %v2077
    %v2079 = vpop.f32.mrf.mxu0
    %v2080 = vadd.f32 %v2051, %v2079
    %2081 = vmatmul.bf16.gmra.mxu0 %v1339
    %v2082 = vpop.f32.mrf.mxu0
    %v2083 = vadd.f32 %v2051, %v2082
    %v2084 = vpop.f32.mrf.mxu0
    %v2085 = vadd.f32 %v2051, %v2084
    %2086 = vmatmul.bf16.gmra.mxu0 %v1340
    %v2087 = vpop.f32.mrf.mxu0
    %v2088 = vadd.f32 %v2051, %v2087
    %v2089 = vpop.f32.mrf.mxu0
    %v2090 = vadd.f32 %v2051, %v2089
    %2091 = vmatmul.bf16.gmra.mxu0 %v1341
    %v2092 = vpop.f32.mrf.mxu0
    %v2093 = vadd.f32 %v2051, %v2092
    %v2094 = vpop.f32.mrf.mxu0
    %v2095 = vadd.f32 %v2051, %v2094
    %2096 = vmatmul.bf16.gmra.mxu0 %v1342
    %v2097 = vpop.f32.mrf.mxu0
    %v2098 = vadd.f32 %v2051, %v2097
    %v2099 = vpop.f32.mrf.mxu0
    %v2100 = vadd.f32 %v2051, %v2099
    %2101 = vdwg.mxu0
    %v2102 = vmax.f32 %v2063, 0.0
    %v2103 = vmax.f32 %v2065, 0.0
    %v2104 = vmax.f32 %v2068, 0.0
    %v2105 = vmax.f32 %v2070, 0.0
    %v2106 = vmax.f32 %v2073, 0.0
    %v2107 = vmax.f32 %v2075, 0.0
    %v2108 = vmax.f32 %v2078, 0.0
    %v2109 = vmax.f32 %v2080, 0.0
    %v2110 = vmax.f32 %v2083, 0.0
    %v2111 = vmax.f32 %v2085, 0.0
    %v2112 = vmax.f32 %v2088, 0.0
    %v2113 = vmax.f32 %v2090, 0.0
    %v2114 = vmax.f32 %v2093, 0.0
    %v2115 = vmax.f32 %v2095, 0.0
    %v2116 = vmax.f32 %v2098, 0.0
    %v2117 = vmax.f32 %v2100, 0.0
    %s2118 = sld [smem:[#allocation2 + $0x7]]
    %v2119 = vstv %s2118
    %v2120 = vmul.f32 %v2102, %v2119
    %v2121 = vmul.f32 %v2103, %v2119
    %v2122 = vmul.f32 %v2104, %v2119
    %v2123 = vmul.f32 %v2105, %v2119
    %v2124 = vmul.f32 %v2106, %v2119
    %v2125 = vmul.f32 %v2107, %v2119
    %v2126 = vmul.f32 %v2108, %v2119
    %v2127 = vmul.f32 %v2109, %v2119
    %v2128 = vmul.f32 %v2110, %v2119
    %v2129 = vmul.f32 %v2111, %v2119
    %v2130 = vmul.f32 %v2112, %v2119
    %v2131 = vmul.f32 %v2113, %v2119
    %v2132 = vmul.f32 %v2114, %v2119
    %v2133 = vmul.f32 %v2115, %v2119
    %v2134 = vmul.f32 %v2116, %v2119
    %v2135 = vmul.f32 %v2117, %v2119
    %v2136 = vadd.f32 %v1902, %v2120
    %v2137 = vadd.f32 %v1903, %v2121
    %v2138 = vadd.f32 %v1904, %v2122
    %v2139 = vadd.f32 %v1905, %v2123
    %v2140 = vadd.f32 %v1906, %v2124
    %v2141 = vadd.f32 %v1907, %v2125
    %v2142 = vadd.f32 %v1908, %v2126
    %v2143 = vadd.f32 %v1909, %v2127
    %v2144 = vadd.f32 %v1910, %v2128
    %v2145 = vadd.f32 %v1911, %v2129
    %v2146 = vadd.f32 %v1912, %v2130
    %v2147 = vadd.f32 %v1913, %v2131
    %v2148 = vadd.f32 %v1914, %v2132
    %v2149 = vadd.f32 %v1915, %v2133
    %v2150 = vadd.f32 %v1916, %v2134
    %v2151 = vadd.f32 %v1917, %v2135
    %v2152 = vpack.c.bf16 %v2137, %v2136
    %v2153 = vpack.c.bf16 %v2139, %v2138
    %v2154 = vpack.c.bf16 %v2141, %v2140
    %v2155 = vpack.c.bf16 %v2143, %v2142
    %v2156 = vpack.c.bf16 %v2145, %v2144
    %v2157 = vpack.c.bf16 %v2147, %v2146
    %v2158 = vpack.c.bf16 %v2149, %v2148
    %v2159 = vpack.c.bf16 %v2151, %v2150
    %v2160 = vld [vmem:[%s7] sm:$0xf]
    %v2161 = vld [vmem:[%s7 + $0x4] sm:$0xf]
    %v2162 = vld [vmem:[%s7 + $0x8] sm:$0xf]
    %v2163 = vld [vmem:[%s7 + $0xc] sm:$0xf]
    %v2164 = vld [vmem:[%s7 + $0x10] sm:$0xf]
    %v2165 = vld [vmem:[%s7 + $0x14] sm:$0xf]
    %v2166 = vld [vmem:[%s7 + $0x18] sm:$0xf]
    %v2167 = vld [vmem:[%s7 + $0x1c] sm:$0xf]
    %v2168 = vld [vmem:[%s7 + $0x20] sm:$0xf]
    %v2169 = vld [vmem:[%s7 + $0x24] sm:$0xf]
    %v2170 = vld [vmem:[%s7 + $0x28] sm:$0xf]
    %v2171 = vld [vmem:[%s7 + $0x2c] sm:$0xf]
    %v2172 = vld [vmem:[%s7 + $0x30] sm:$0xf]
    %v2173 = vld [vmem:[%s7 + $0x34] sm:$0xf]
    %v2174 = vld [vmem:[%s7 + $0x38] sm:$0xf]
    %v2175 = vld [vmem:[%s7 + $0x3c] sm:$0xf]
    %v2176 = vld [vmem:[%s8] sm:$0x1]
    %v2178 = vperm.slane %v2176, 0
    %v2196 = vunpack.c.l.b16 %v2160
    %v2197 = vunpack.c.l.b16 %v2161
    %v2198 = vunpack.c.l.b16 %v2162
    %v2199 = vunpack.c.l.b16 %v2163
    %v2200 = vunpack.c.l.b16 %v2164
    %v2201 = vunpack.c.l.b16 %v2165
    %v2202 = vunpack.c.l.b16 %v2166
    %v2203 = vunpack.c.l.b16 %v2167
    %v2204 = vunpack.c.l.b16 %v2168
    %v2205 = vunpack.c.l.b16 %v2169
    %v2206 = vunpack.c.l.b16 %v2170
    %v2207 = vunpack.c.l.b16 %v2171
    %v2208 = vunpack.c.l.b16 %v2172
    %v2209 = vunpack.c.l.b16 %v2173
    %v2210 = vunpack.c.l.b16 %v2174
    %v2211 = vunpack.c.l.b16 %v2175
    %v2212 = vpack.c.b16 %v2197, %v2196
    %v2213 = vpack.c.b16 %v2199, %v2198
    %v2214 = vpack.c.b16 %v2201, %v2200
    %v2215 = vpack.c.b16 %v2203, %v2202
    %v2216 = vpack.c.b16 %v2205, %v2204
    %v2217 = vpack.c.b16 %v2207, %v2206
    %v2218 = vpack.c.b16 %v2209, %v2208
    %v2219 = vpack.c.b16 %v2211, %v2210
    %2228 = vmatpush.bf16.msra.mxu0 %v2219
    %2229 = vmatpush.bf16.msra.mxu0 %v2218
    %2230 = vmatpush.bf16.msra.mxu0 %v2217
    %2231 = vmatpush.bf16.msra.mxu0 %v2216
    %2232 = vmatpush.bf16.msra.mxu0 %v2215
    %2233 = vmatpush.bf16.msra.mxu0 %v2214
    %2234 = vmatpush.bf16.msra.mxu0 %v2213
    %2235 = vmatpush.bf16.msra.mxu0 %v2212
    %2236 = vmatmul.bf16.gmra.mxu0 %v2152
    %v2237 = vpop.f32.mrf.mxu0
    %v2238 = vadd.f32 %v2178, %v2237
    %v2239 = vpop.f32.mrf.mxu0
    %v2240 = vadd.f32 %v2178, %v2239
    %2241 = vmatmul.bf16.gmra.mxu0 %v2153
    %v2242 = vpop.f32.mrf.mxu0
    %v2243 = vadd.f32 %v2178, %v2242
    %v2244 = vpop.f32.mrf.mxu0
    %v2245 = vadd.f32 %v2178, %v2244
    %2246 = vmatmul.bf16.gmra.mxu0 %v2154
    %v2247 = vpop.f32.mrf.mxu0
    %v2248 = vadd.f32 %v2178, %v2247
    %v2249 = vpop.f32.mrf.mxu0
    %v2250 = vadd.f32 %v2178, %v2249
    %2251 = vmatmul.bf16.gmra.mxu0 %v2155
    %v2252 = vpop.f32.mrf.mxu0
    %v2253 = vadd.f32 %v2178, %v2252
    %v2254 = vpop.f32.mrf.mxu0
    %v2255 = vadd.f32 %v2178, %v2254
    %2256 = vmatmul.bf16.gmra.mxu0 %v2156
    %v2257 = vpop.f32.mrf.mxu0
    %v2258 = vadd.f32 %v2178, %v2257
    %v2259 = vpop.f32.mrf.mxu0
    %v2260 = vadd.f32 %v2178, %v2259
    %2261 = vmatmul.bf16.gmra.mxu0 %v2157
    %v2262 = vpop.f32.mrf.mxu0
    %v2263 = vadd.f32 %v2178, %v2262
    %v2264 = vpop.f32.mrf.mxu0
    %v2265 = vadd.f32 %v2178, %v2264
    %2266 = vmatmul.bf16.gmra.mxu0 %v2158
    %v2267 = vpop.f32.mrf.mxu0
    %v2268 = vadd.f32 %v2178, %v2267
    %v2269 = vpop.f32.mrf.mxu0
    %v2270 = vadd.f32 %v2178, %v2269
    %2271 = vmatmul.bf16.gmra.mxu0 %v2159
    %v2272 = vpop.f32.mrf.mxu0
    %v2273 = vadd.f32 %v2178, %v2272
    %v2274 = vpop.f32.mrf.mxu0
    %v2275 = vadd.f32 %v2178, %v2274
    %2276 = vdwg.mxu0
    %vm2277 = vcmask 130048
    %v2278 = vsel %vm2277, %v2238, -inf
    %2279 = vmax.xlane.f32.xlu0 %v2278
    %v2280 = vpop.xlane.xlu0 %2279
    %v2281 = vsel %vm2277, %v2240, -inf
    %2282 = vmax.xlane.f32.xlu0 %v2281
    %v2283 = vpop.xlane.xlu0 %2282
    %v2284 = vsel %vm2277, %v2243, -inf
    %2285 = vmax.xlane.f32.xlu0 %v2284
    %v2286 = vpop.xlane.xlu0 %2285
    %v2287 = vsel %vm2277, %v2245, -inf
    %2288 = vmax.xlane.f32.xlu0 %v2287
    %v2289 = vpop.xlane.xlu0 %2288
    %v2290 = vsel %vm2277, %v2248, -inf
    %2291 = vmax.xlane.f32.xlu0 %v2290
    %v2292 = vpop.xlane.xlu0 %2291
    %v2293 = vsel %vm2277, %v2250, -inf
    %2294 = vmax.xlane.f32.xlu0 %v2293
    %v2295 = vpop.xlane.xlu0 %2294
    %v2296 = vsel %vm2277, %v2253, -inf
    %2297 = vmax.xlane.f32.xlu0 %v2296
    %v2298 = vpop.xlane.xlu0 %2297
    %v2299 = vsel %vm2277, %v2255, -inf
    %2300 = vmax.xlane.f32.xlu0 %v2299
    %v2301 = vpop.xlane.xlu0 %2300
    %v2302 = vsel %vm2277, %v2258, -inf
    %2303 = vmax.xlane.f32.xlu0 %v2302
    %v2304 = vpop.xlane.xlu0 %2303
    %v2305 = vsel %vm2277, %v2260, -inf
    %2306 = vmax.xlane.f32.xlu0 %v2305
    %v2307 = vpop.xlane.xlu0 %2306
    %v2308 = vsel %vm2277, %v2263, -inf
    %2309 = vmax.xlane.f32.xlu0 %v2308
    %v2310 = vpop.xlane.xlu0 %2309
    %v2311 = vsel %vm2277, %v2265, -inf
    %2312 = vmax.xlane.f32.xlu0 %v2311
    %v2313 = vpop.xlane.xlu0 %2312
    %v2314 = vsel %vm2277, %v2268, -inf
    %2315 = vmax.xlane.f32.xlu0 %v2314
    %v2316 = vpop.xlane.xlu0 %2315
    %v2317 = vsel %vm2277, %v2270, -inf
    %2318 = vmax.xlane.f32.xlu0 %v2317
    %v2319 = vpop.xlane.xlu0 %2318
    %v2320 = vsel %vm2277, %v2273, -inf
    %2321 = vmax.xlane.f32.xlu0 %v2320
    %v2322 = vpop.xlane.xlu0 %2321
    %v2323 = vsel %vm2277, %v2275, -inf
    %2324 = vmax.xlane.f32.xlu0 %v2323
    %v2325 = vpop.xlane.xlu0 %2324
    %v2326 = vsub.f32 %v2238, %v2280
    %v2327 = vsub.f32 %v2240, %v2283
    %v2328 = vsub.f32 %v2243, %v2286
    %v2329 = vsub.f32 %v2245, %v2289
    %v2330 = vsub.f32 %v2248, %v2292
    %v2331 = vsub.f32 %v2250, %v2295
    %v2332 = vsub.f32 %v2253, %v2298
    %v2333 = vsub.f32 %v2255, %v2301
    %v2334 = vsub.f32 %v2258, %v2304
    %v2335 = vsub.f32 %v2260, %v2307
    %v2336 = vsub.f32 %v2263, %v2310
    %v2337 = vsub.f32 %v2265, %v2313
    %v2338 = vsub.f32 %v2268, %v2316
    %v2339 = vsub.f32 %v2270, %v2319
    %v2340 = vsub.f32 %v2273, %v2322
    %v2341 = vsub.f32 %v2275, %v2325
    %v2342 = vmul.f32 %v2326, 1.442695
    %v2343 = vpow.pop %v2342
    %v2344 = vmul.f32 %v2327, 1.442695
    %v2345 = vpow.pop %v2344
    %v2346 = vmul.f32 %v2328, 1.442695
    %v2347 = vpow.pop %v2346
    %v2348 = vmul.f32 %v2329, 1.442695
    %v2349 = vpow.pop %v2348
    %v2350 = vmul.f32 %v2330, 1.442695
    %v2351 = vpow.pop %v2350
    %v2352 = vmul.f32 %v2331, 1.442695
    %v2353 = vpow.pop %v2352
    %v2354 = vmul.f32 %v2332, 1.442695
    %v2355 = vpow.pop %v2354
    %v2356 = vmul.f32 %v2333, 1.442695
    %v2357 = vpow.pop %v2356
    %v2358 = vmul.f32 %v2334, 1.442695
    %v2359 = vpow.pop %v2358
    %v2360 = vmul.f32 %v2335, 1.442695
    %v2361 = vpow.pop %v2360
    %v2362 = vmul.f32 %v2336, 1.442695
    %v2363 = vpow.pop %v2362
    %v2364 = vmul.f32 %v2337, 1.442695
    %v2365 = vpow.pop %v2364
    %v2366 = vmul.f32 %v2338, 1.442695
    %v2367 = vpow.pop %v2366
    %v2368 = vmul.f32 %v2339, 1.442695
    %v2369 = vpow.pop %v2368
    %v2370 = vmul.f32 %v2340, 1.442695
    %v2371 = vpow.pop %v2370
    %v2372 = vmul.f32 %v2341, 1.442695
    %v2373 = vpow.pop %v2372
    %v2374 = vsel %vm2277, %v2343, 0.0
    %2375 = vadd.xlane.f32.xlu0 %v2374
    %v2376 = vpop.xlane.xlu0 %2375
    %v2377 = vsel %vm2277, %v2345, 0.0
    %2378 = vadd.xlane.f32.xlu0 %v2377
    %v2379 = vpop.xlane.xlu0 %2378
    %v2380 = vsel %vm2277, %v2347, 0.0
    %2381 = vadd.xlane.f32.xlu0 %v2380
    %v2382 = vpop.xlane.xlu0 %2381
    %v2383 = vsel %vm2277, %v2349, 0.0
    %2384 = vadd.xlane.f32.xlu0 %v2383
    %v2385 = vpop.xlane.xlu0 %2384
    %v2386 = vsel %vm2277, %v2351, 0.0
    %2387 = vadd.xlane.f32.xlu0 %v2386
    %v2388 = vpop.xlane.xlu0 %2387
    %v2389 = vsel %vm2277, %v2353, 0.0
    %2390 = vadd.xlane.f32.xlu0 %v2389
    %v2391 = vpop.xlane.xlu0 %2390
    %v2392 = vsel %vm2277, %v2355, 0.0
    %2393 = vadd.xlane.f32.xlu0 %v2392
    %v2394 = vpop.xlane.xlu0 %2393
    %v2395 = vsel %vm2277, %v2357, 0.0
    %2396 = vadd.xlane.f32.xlu0 %v2395
    %v2397 = vpop.xlane.xlu0 %2396
    %v2398 = vsel %vm2277, %v2359, 0.0
    %2399 = vadd.xlane.f32.xlu0 %v2398
    %v2400 = vpop.xlane.xlu0 %2399
    %v2401 = vsel %vm2277, %v2361, 0.0
    %2402 = vadd.xlane.f32.xlu0 %v2401
    %v2403 = vpop.xlane.xlu0 %2402
    %v2404 = vsel %vm2277, %v2363, 0.0
    %2405 = vadd.xlane.f32.xlu0 %v2404
    %v2406 = vpop.xlane.xlu0 %2405
    %v2407 = vsel %vm2277, %v2365, 0.0
    %2408 = vadd.xlane.f32.xlu0 %v2407
    %v2409 = vpop.xlane.xlu0 %2408
    %v2410 = vsel %vm2277, %v2367, 0.0
    %2411 = vadd.xlane.f32.xlu0 %v2410
    %v2412 = vpop.xlane.xlu0 %2411
    %v2413 = vsel %vm2277, %v2369, 0.0
    %2414 = vadd.xlane.f32.xlu0 %v2413
    %v2415 = vpop.xlane.xlu0 %2414
    %v2416 = vsel %vm2277, %v2371, 0.0
    %2417 = vadd.xlane.f32.xlu0 %v2416
    %v2418 = vpop.xlane.xlu0 %2417
    %v2419 = vsel %vm2277, %v2373, 0.0
    %2420 = vadd.xlane.f32.xlu0 %v2419
    %v2421 = vpop.xlane.xlu0 %2420
    %v2422 = vlog2.pop %v2376
    %v2423 = vmul.f32 %v2422, 0.6931472
    %v2424 = vlog2.pop %v2379
    %v2425 = vmul.f32 %v2424, 0.6931472
    %v2426 = vlog2.pop %v2382
    %v2427 = vmul.f32 %v2426, 0.6931472
    %v2428 = vlog2.pop %v2385
    %v2429 = vmul.f32 %v2428, 0.6931472
    %v2430 = vlog2.pop %v2388
    %v2431 = vmul.f32 %v2430, 0.6931472
    %v2432 = vlog2.pop %v2391
    %v2433 = vmul.f32 %v2432, 0.6931472
    %v2434 = vlog2.pop %v2394
    %v2435 = vmul.f32 %v2434, 0.6931472
    %v2436 = vlog2.pop %v2397
    %v2437 = vmul.f32 %v2436, 0.6931472
    %v2438 = vlog2.pop %v2400
    %v2439 = vmul.f32 %v2438, 0.6931472
    %v2440 = vlog2.pop %v2403
    %v2441 = vmul.f32 %v2440, 0.6931472
    %v2442 = vlog2.pop %v2406
    %v2443 = vmul.f32 %v2442, 0.6931472
    %v2444 = vlog2.pop %v2409
    %v2445 = vmul.f32 %v2444, 0.6931472
    %v2446 = vlog2.pop %v2412
    %v2447 = vmul.f32 %v2446, 0.6931472
    %v2448 = vlog2.pop %v2415
    %v2449 = vmul.f32 %v2448, 0.6931472
    %v2450 = vlog2.pop %v2418
    %v2451 = vmul.f32 %v2450, 0.6931472
    %v2452 = vlog2.pop %v2421
    %v2453 = vmul.f32 %v2452, 0.6931472
    %v2454 = vadd.f32 %v2423, %v2280
    %v2455 = vadd.f32 %v2425, %v2283
    %v2456 = vadd.f32 %v2427, %v2286
    %v2457 = vadd.f32 %v2429, %v2289
    %v2458 = vadd.f32 %v2431, %v2292
    %v2459 = vadd.f32 %v2433, %v2295
    %v2460 = vadd.f32 %v2435, %v2298
    %v2461 = vadd.f32 %v2437, %v2301
    %v2462 = vadd.f32 %v2439, %v2304
    %v2463 = vadd.f32 %v2441, %v2307
    %v2464 = vadd.f32 %v2443, %v2310
    %v2465 = vadd.f32 %v2445, %v2313
    %v2466 = vadd.f32 %v2447, %v2316
    %v2467 = vadd.f32 %v2449, %v2319
    %v2468 = vadd.f32 %v2451, %v2322
    %v2469 = vadd.f32 %v2453, %v2325
    %v2470 = vsub.f32 %v2238, %v2454
    %v2471 = vsub.f32 %v2240, %v2455
    %v2472 = vsub.f32 %v2243, %v2456
    %v2473 = vsub.f32 %v2245, %v2457
    %v2474 = vsub.f32 %v2248, %v2458
    %v2475 = vsub.f32 %v2250, %v2459
    %v2476 = vsub.f32 %v2253, %v2460
    %v2477 = vsub.f32 %v2255, %v2461
    %v2478 = vsub.f32 %v2258, %v2462
    %v2479 = vsub.f32 %v2260, %v2463
    %v2480 = vsub.f32 %v2263, %v2464
    %v2481 = vsub.f32 %v2265, %v2465
    %v2482 = vsub.f32 %v2268, %v2466
    %v2483 = vsub.f32 %v2270, %v2467
    %v2484 = vsub.f32 %v2273, %v2468
    %v2485 = vsub.f32 %v2275, %v2469
    %2486 = vst.msk [vmem:[%s9] sm:$0xff] %vm2277, %v2470
    %2487 = vst.msk [vmem:[%s9 + $0x8] sm:$0xff] %vm2277, %v2471
    %2488 = vst.msk [vmem:[%s9 + $0x10] sm:$0xff] %vm2277, %v2472
    %2489 = vst.msk [vmem:[%s9 + $0x18] sm:$0xff] %vm2277, %v2473
    %2490 = vst.msk [vmem:[%s9 + $0x20] sm:$0xff] %vm2277, %v2474
    %2491 = vst.msk [vmem:[%s9 + $0x28] sm:$0xff] %vm2277, %v2475
    %2492 = vst.msk [vmem:[%s9 + $0x30] sm:$0xff] %vm2277, %v2476
    %2493 = vst.msk [vmem:[%s9 + $0x38] sm:$0xff] %vm2277, %v2477
    %2494 = vst.msk [vmem:[%s9 + $0x40] sm:$0xff] %vm2277, %v2478
    %2495 = vst.msk [vmem:[%s9 + $0x48] sm:$0xff] %vm2277, %v2479
    %2496 = vst.msk [vmem:[%s9 + $0x50] sm:$0xff] %vm2277, %v2480
    %2497 = vst.msk [vmem:[%s9 + $0x58] sm:$0xff] %vm2277, %v2481
    %2498 = vst.msk [vmem:[%s9 + $0x60] sm:$0xff] %vm2277, %v2482
    %2499 = vst.msk [vmem:[%s9 + $0x68] sm:$0xff] %vm2277, %v2483
    %2500 = vst.msk [vmem:[%s9 + $0x70] sm:$0xff] %vm2277, %v2484
    %2501 = vst.msk [vmem:[%s9 + $0x78] sm:$0xff] %vm2277, %v2485
    // Predicated region
    $region42: #{gcn_res_forward.1} parent=1 // pred_check
      _
    $region43: #{gcn_res_forward.1} parent=1 // pred_check_branch
      %2503 = sbr.rel (0) target = $region45
    $region44: #{gcn_res_forward.1} parent=1 // pred_region
      _
    $region45: #{gcn_res_forward.1} parent=1 // pred_fallthru
      _
    // Predicated region
    $region46: #{gcn_res_forward.1} parent=1 // pred_check
      _
    $region47: #{gcn_res_forward.1} parent=1 // pred_check_branch
      %2505 = sbr.rel (0) target = $region49
    $region48: #{gcn_res_forward.1} parent=1 // pred_region
      _
    $region49: #{gcn_res_forward.1} parent=1 // pred_fallthru
      _
    %2506 = vsyncpa [#allocation3], 1

</llo_original>
